<compile_context>
chip_gen: v7x
topology: tpu7x:2x2x1
jax: 0.10.0
libtpu: 0.0.40
codegen_flags: <defaults>
</compile_context>

<pallas_src>
import math

import jax
import jax.numpy as jnp
import numpy as np
from jax import lax
from jax.experimental import pallas as pl
from jax.experimental.pallas import tpu as pltpu

# Per-head MLP stacking order (each MLP = Linear(D,H)->GELU->Linear(H,D)):
#  0..3  other2text  : W1, B1, W2, B2
#  4..7  other2audio : W1, B1, W2, B2
#  8..11 other2video : W1, B1, W2, B2
# 12..13 text2text   : Ww, Wb
# 14..15 audio2audio : Ww, Wb
# 16..17 video2video : Ww, Wb
NUM_MLP = 18
CROSS_BASE = (0, 4, 8)     # base head index of each modality's Cross_Fusion
SELF_BASE = (12, 14, 16)   # base head index of each modality's Self_Fusion

TWO_PI = 2.0 * math.pi


def _erf(x):
    # Abramowitz & Stegun 7.1.26 (|error| < 1.5e-7): matches nn.GELU()'s exact
    # erf numerics without relying on an erf lowering inside Mosaic.
    a1, a2, a3, a4, a5 = (0.254829592, -0.284496736, 1.421413741,
                          -1.453152027, 1.061405429)
    p = 0.3275911
    s = jnp.where(x >= 0.0, 1.0, -1.0)
    ax = jnp.abs(x)
    t = 1.0 / (1.0 + p * ax)
    poly = ((((a5 * t + a4) * t + a3) * t + a2) * t + a1) * t
    return s * (1.0 - poly * jnp.exp(-ax * ax))


def _gelu_exact(x):
    return 0.5 * x * (1.0 + _erf(x * (1.0 / math.sqrt(2.0))))


def mmf_kernel(lens_ref,
               x_tgt_ref, x_o0_ref, x_o1_ref, gamma_ref, beta_ref,
               w1_ref, b1_ref, w2_ref, b2_ref,
               out_ref):
    """One (batch, modality) step: layernorm, centroids, the 6 filter-MLP heads
    and the masked DFT -> filter -> IDFT fusion for a single target modality."""
    b = pl.program_id(0)
    m = pl.program_id(1)
    S = x_tgt_ref.shape[2]
    H = w2_ref.shape[2]

    gamma = gamma_ref[...]            # (1, D)
    beta = beta_ref[...]              # (1, D)

    def layernorm(x):                 # x: (S, D); eps matches torch default
        mu = jnp.mean(x, axis=-1, keepdims=True)
        var = jnp.mean((x - mu) ** 2, axis=-1, keepdims=True)
        return (x - mu) * lax.rsqrt(var + 1e-5) * gamma + beta

    x_raw = x_tgt_ref[0, 0]           # (S, D) raw target (residual)
    xn_t = layernorm(x_raw)           # normalized target
    xn_0 = layernorm(x_o0_ref[0, 0])  # normalized first "other" modality
    xn_1 = layernorm(x_o1_ref[0, 0])  # normalized second "other" modality

    # Source-modality indices of the two "other" inputs (canonical t,a,v order).
    o0 = jnp.where(m == 0, 1, 0)
    o1 = jnp.where(m == 2, 1, 2)
    len_t = lens_ref[b, m].astype(jnp.float32)
    len_0 = lens_ref[b, o0].astype(jnp.float32)
    len_1 = lens_ref[b, o1].astype(jnp.float32)
    inv_l = 1.0 / len_t

    # Centroids (torch: sum over the full padded seq, divide by true length).
    c0 = jnp.sum(xn_0, axis=0, keepdims=True) / len_0      # (1, D)
    c1 = jnp.sum(xn_1, axis=0, keepdims=True) / len_1
    c2 = jnp.sum(xn_t, axis=0, keepdims=True) * inv_l

    # Per-slot 2-head MLP (scale head + bias head). First layers of the two
    # heads are concatenated along hidden (no inflation); second layers stay
    # per-head (H, D) -> no block-diagonal weight blow-up.
    def slot_mlp(c, j):
        h = jnp.dot(c, w1_ref[0, j], preferred_element_type=jnp.float32) + b1_ref[0, j]
        h = _gelu_exact(h)
        w = (jnp.dot(h[:, :H], w2_ref[0, 2 * j],
                     preferred_element_type=jnp.float32) + b2_ref[0, 2 * j])
        bb = (jnp.dot(h[:, H:], w2_ref[0, 2 * j + 1],
                      preferred_element_type=jnp.float32) + b2_ref[0, 2 * j + 1])
        return w, bb

    w_a, b_a = slot_mlp(c0, 0)        # cross W1/B1 fed by first other centroid
    w_b, b_b = slot_mlp(c1, 1)        # cross W2/B2 fed by second other centroid
    w_s, b_s = slot_mlp(c2, 2)        # self  Ww/Wb fed by the target centroid

    # Cross + self filters merged through IFFT linearity.
    scale = 2.0 + 0.5 * (w_a + w_b) + w_s                  # (1, D)
    bias = 0.5 * (b_a + b_b) + b_s                         # (1, D)

    # --- masked DFT -> filter -> IDFT over the first len_t rows --------------
    # Phase rebuilt per step from 1-D iotas; n*k is exact in f32 for S <= 4096
    # and reduced mod len before the 2*pi multiply so cos/sin stay accurate.
    n_col = lax.broadcasted_iota(jnp.int32, (S, 1), 0).astype(jnp.float32)
    k_row = lax.broadcasted_iota(jnp.int32, (1, S), 1).astype(jnp.float32)
    row_mask = (n_col < len_t).astype(jnp.float32)         # (S, 1)

    nk = n_col * k_row                                     # (S, S) transient f32
    r = nk - jnp.floor(nk * inv_l) * len_t                 # == (n*k) mod len (+- len)
    ang = (TWO_PI * inv_l) * r
    cosm = jnp.cos(ang).astype(jnp.bfloat16)               # bf16 MXU operands,
    sinm = jnp.sin(ang).astype(jnp.bfloat16)               # f32 accumulation

    xn_m = (xn_t * row_mask).astype(jnp.bfloat16)          # zero padded rows
    fre = jnp.dot(cosm, xn_m, preferred_element_type=jnp.float32)   # Re(FFT)
    sim = jnp.dot(sinm, xn_m, preferred_element_type=jnp.float32)   # -Im(FFT)

    fr = ((fre * scale + bias) * row_mask).astype(jnp.bfloat16)     # Re(filtered)
    gi = ((sim * scale) * row_mask).astype(jnp.bfloat16)            # -Im(filtered)

    out = (jnp.dot(cosm, fr, preferred_element_type=jnp.float32)
           + jnp.dot(sinm, gi, preferred_element_type=jnp.float32))  # len * Re(IFFT)
    # zero padded output rows, apply 1/len, add the raw residual
    out_ref[0, 0] = out * (inv_l * row_mask) + x_raw


def _pack_weights(win, b_in, wout, b_out):
    """Regroup the 18 tiny MLPs into per-(target-modality, slot) tables.

    slot 0: Cross_Fusion W1/B1 heads (fed by the first  "other" centroid)
    slot 1: Cross_Fusion W2/B2 heads (fed by the second "other" centroid)
    slot 2: Self_Fusion  Ww/Wb heads (fed by the target's own centroid)
    """
    w1t, b1t, w2t, b2t = [], [], [], []
    for mi in range(3):
        heads = [(CROSS_BASE[mi] + 0, CROSS_BASE[mi] + 1),
                 (CROSS_BASE[mi] + 2, CROSS_BASE[mi] + 3),
                 (SELF_BASE[mi], SELF_BASE[mi] + 1)]
        w1t.append(jnp.stack([jnp.concatenate([win[a], win[c]], axis=1) for a, c in heads]))
        b1t.append(jnp.stack([jnp.concatenate([b_in[a], b_in[c]], axis=1) for a, c in heads]))
        w2t.append(jnp.stack([wout[h] for pair in heads for h in pair]))
        b2t.append(jnp.stack([b_out[h] for pair in heads for h in pair]))
    return (jnp.stack(w1t),    # (3, 3, D, 2H)
            jnp.stack(b1t),    # (3, 3, 1, 2H)
            jnp.stack(w2t),    # (3, 6, H, D)
            jnp.stack(b2t))    # (3, 6, 1, D)


def _vmem_limit_bytes(S, D, H):
    # Working set of one (batch, modality) step: bf16 cos/sin pair, transient
    # f32 (S,S) phase, a handful of f32 (S,D) temporaries, double-buffered I/O
    # blocks and the per-modality weight slices.
    sxs, sxd = S * S, S * D
    est = (2 * sxs * 2            # cos/sin (bf16)
           + 2 * sxs * 4          # transient f32 nk / ang
           + 10 * sxd * 4         # (S,D) f32 temporaries
           + 2 * 4 * sxd * 4      # double-buffered 3 inputs + 1 output
           + 8 * (3 * D * 2 * H + 6 * H * D + 6 * H + 6 * D) * 4)
    est = int(est * 1.25) + (4 << 20)
    # TODO(synk): for S >= ~2048 on v7x switch to a row-block tiled DFT/IDFT
    # instead of raising the limit further.
    return max(32 << 20, min(est, 100 << 20))


def multimodal_fourier(xt, xa, xv, lens, gamma, beta, win, b_in, wout, b_out):
    B, S, D = xt.shape
    H = win.shape[-1]

    x_all = jnp.stack([xt, xa, xv], axis=0)                 # (3, B, S, D)
    w1t, b1t, w2t, b2t = _pack_weights(win, b_in, wout, b_out)

    x_block = (1, 1, S, D)
    # index maps: (b, m, lens_smem_ref) -> block indices.  The two "other"
    # inputs pick the non-target modalities in canonical (t, a, v) order.
    tgt_map = lambda b, m, lens: (m, b, 0, 0)
    o0_map = lambda b, m, lens: (jnp.where(m == 0, 1, 0), b, 0, 0)
    o1_map = lambda b, m, lens: (jnp.where(m == 2, 1, 2), b, 0, 0)
    const2 = lambda b, m, lens: (0, 0)
    wmap = lambda b, m, lens: (m, 0, 0, 0)

    grid_spec = pltpu.PrefetchScalarGridSpec(
        num_scalar_prefetch=1,
        grid=(B, 3),
        in_specs=[
            pl.BlockSpec(x_block, tgt_map),                  # target modality block
            pl.BlockSpec(x_block, o0_map),                   # first other modality
            pl.BlockSpec(x_block, o1_map),                   # second other modality
            pl.BlockSpec((1, D), const2),                    # gamma
            pl.BlockSpec((1, D), const2),                    # beta
            pl.BlockSpec((1, 3, D, 2 * H), wmap),            # first-layer weights
            pl.BlockSpec((1, 3, 1, 2 * H), wmap),            # first-layer biases
            pl.BlockSpec((1, 6, H, D), wmap),                # per-head second-layer weights
            pl.BlockSpec((1, 6, 1, D), wmap),                # per-head second-layer biases
        ],
        out_specs=pl.BlockSpec(x_block, tgt_map),
    )

    weight_bytes = 4 * (w1t.size + b1t.size + w2t.size + b2t.size)
    cost = pl.CostEstimate(
        flops=int(24 * B * S * S * D),                       # 4 (S,S)@(S,D) per (b,m) step
        transcendentals=int(6 * B * S * S),                  # cos + sin per (b,m) step
        bytes_accessed=int(12 * B * S * D * 4 + 3 * weight_bytes),
    )

    out = pl.pallas_call(
        mmf_kernel,
        out_shape=jax.ShapeDtypeStruct((3, B, S, D), jnp.float32),
        grid_spec=grid_spec,
        compiler_params=pltpu.CompilerParams(
            dimension_semantics=("parallel", "parallel"),    # megacore-shardable
            vmem_limit_bytes=_vmem_limit_bytes(S, D, H),
        ),
        cost_estimate=cost,
    )(lens, x_all, x_all, x_all, gamma, beta, w1t, b1t, w2t, b2t)
    return out[0], out[1], out[2]


def reference(xt, xa, xv, lens, gamma, beta, win, b_in, wout, b_out):
    xt, xa, xv = np.asarray(xt, np.float64), np.asarray(xa, np.float64), np.asarray(xv, np.float64)
    gamma, beta = np.asarray(gamma), np.asarray(beta)
    win, b_in, wout, b_out = map(np.asarray, (win, b_in, wout, b_out))
    lens = np.asarray(lens)
    B = xt.shape[0]

    def ln(x):
        mu = x.mean(-1, keepdims=True)
        var = ((x - mu) ** 2).mean(-1, keepdims=True)
        return (x - mu) / np.sqrt(var + 1e-5) * gamma[0] + beta[0]

    def gelu(x):
        return np.asarray(jax.nn.gelu(jnp.asarray(x), approximate=False))

    def mlp(c, idx):
        h = gelu(c @ win[idx] + b_in[idx, 0])
        return h @ wout[idx] + b_out[idx, 0]

    def fftf(x, ls):
        out = np.zeros(x.shape, dtype=np.complex128)
        for i in range(B):
            out[i, :ls[i]] = np.fft.fft(x[i, :ls[i]], axis=0)
        return out

    def ifftf(x, ls):
        out = np.zeros(x.shape, dtype=np.complex128)
        for i in range(B):
            out[i, :ls[i]] = np.fft.ifft(x[i, :ls[i]], axis=0)
        return out

    def cross(x, y, z, lx, ly, lz, i0):
        xf = fftf(x, lx)
        c1 = y.sum(1) / ly[:, None]
        c2 = z.sum(1) / lz[:, None]
        w = (mlp(c1, i0) + mlp(c2, i0 + 2)) / 2.0
        b = (mlp(c1, i0 + 1) + mlp(c2, i0 + 3)) / 2.0
        filt = xf * (1.0 + w[:, None, :]) + b[:, None, :]
        return ifftf(filt, lx).real

    def selff(x, lx, i0):
        xf = fftf(x, lx)
        c = x.sum(1) / lx[:, None]
        w, b = mlp(c, i0), mlp(c, i0 + 1)
        filt = xf * (1.0 + w[:, None, :]) + b[:, None, :]
        return ifftf(filt, lx).real

    lt, la, lv = lens[:, 0], lens[:, 1], lens[:, 2]
    xtn, xan, xvn = ln(xt), ln(xa), ln(xv)
    ft = cross(xtn, xan, xvn, lt, la, lv, 0) + selff(xtn, lt, 12) + xt
    fa = cross(xan, xtn, xvn, la, lt, lv, 4) + selff(xan, la, 14) + xa
    fv = cross(xvn, xtn, xan, lv, lt, la, 8) + selff(xvn, lv, 16) + xv
    return ft, fa, fv


if __name__ == "__main__":
    B, S, D, H = 2, 8, 32, 32  # batch, seq, modal_dim, hid_dim

    key = jax.random.PRNGKey(0)
    ks = jax.random.split(key, 8)

    xt = jax.random.normal(ks[0], (B, S, D), jnp.float32)
    xa = jax.random.normal(ks[1], (B, S, D), jnp.float32)
    xv = jax.random.normal(ks[2], (B, S, D), jnp.float32)
    lens = jnp.array([[8, 6, 5], [7, 8, 4]], dtype=jnp.int32)  # (len_t, len_a, len_v)

    # Deterministic synthetic parameters (shapes from the module's __init__).
    xav = math.sqrt(2.0 / (D + H))
    win = jax.random.normal(ks[3], (NUM_MLP, D, H), jnp.float32) * xav
    b_in = jax.random.normal(ks[4], (NUM_MLP, 1, H), jnp.float32) * 0.05
    wout = jax.random.normal(ks[5], (NUM_MLP, H, D), jnp.float32) * xav
    b_out = jax.random.normal(ks[6], (NUM_MLP, 1, D), jnp.float32) * 0.05
    gamma = jnp.ones((1, D), jnp.float32)   # nn.LayerNorm defaults
    beta = jnp.zeros((1, D), jnp.float32)

    ft, fa, fv = jax.block_until_ready(
        multimodal_fourier(xt, xa, xv, lens, gamma, beta, win, b_in, wout, b_out)
    )

    rt, ra, rv = reference(xt, xa, xv, lens, gamma, beta, win, b_in, wout, b_out)
    # Tolerance relaxed vs. the f32 version: the DFT/IDFT matmuls now use bf16
    # MXU operands (per perf review), which bounds per-element error ~1e-2.
    assert np.allclose(np.asarray(ft), rt, atol=7e-2, rtol=3e-2)
    assert np.allclose(np.asarray(fa), ra, atol=7e-2, rtol=3e-2)
    assert np.allclose(np.asarray(fv), rv, atol=7e-2, rtol=3e-2)
    print("KERNEL_OK")
</pallas_src>

<mosaic_0001>
module attributes {stable_mosaic.version = 11 : i64} {
  func.func @mmf_kernel(%arg0: i32, %arg1: i32, %arg2: memref<2x3xi32, #tpu.memory_space<smem>>, %arg3: memref<1x1x8x32xf32, #tpu.memory_space<vmem>>, %arg4: memref<1x1x8x32xf32, #tpu.memory_space<vmem>>, %arg5: memref<1x1x8x32xf32, #tpu.memory_space<vmem>>, %arg6: memref<1x32xf32, #tpu.memory_space<vmem>>, %arg7: memref<1x32xf32, #tpu.memory_space<vmem>>, %arg8: memref<1x3x32x64xf32, #tpu.memory_space<vmem>>, %arg9: memref<1x3x1x64xf32, #tpu.memory_space<vmem>>, %arg10: memref<1x6x32x32xf32, #tpu.memory_space<vmem>>, %arg11: memref<1x6x1x32xf32, #tpu.memory_space<vmem>>, %arg12: memref<1x1x8x32xf32, #tpu.memory_space<vmem>>) attributes {dimension_semantics = [#tpu.dimension_semantics<parallel>, #tpu.dimension_semantics<parallel>], iteration_bounds = array<i64: 2, 3>, scalar_prefetch = 1 : i64, scratch_operands = 0 : i64, tpu.core_type = #tpu.core_type<tc>, window_params = [{transform_indices = @transform_0, window_bounds = array<i64: 1, 1, 8, 32>}, {transform_indices = @transform_1, window_bounds = array<i64: 1, 1, 8, 32>}, {transform_indices = @transform_2, window_bounds = array<i64: 1, 1, 8, 32>}, {pipeline_mode = #tpu.pipeline_mode<synchronous>, transform_indices = @transform_3, window_bounds = array<i64: 1, 32>}, {pipeline_mode = #tpu.pipeline_mode<synchronous>, transform_indices = @transform_4, window_bounds = array<i64: 1, 32>}, {transform_indices = @transform_5, window_bounds = array<i64: 1, 3, 32, 64>}, {transform_indices = @transform_6, window_bounds = array<i64: 1, 3, 1, 64>}, {transform_indices = @transform_7, window_bounds = array<i64: 1, 6, 32, 32>}, {transform_indices = @transform_8, window_bounds = array<i64: 1, 6, 1, 32>}, {transform_indices = @transform_9, window_bounds = array<i64: 1, 1, 8, 32>}]} {
    %c0 = arith.constant 0 : index
    %c0_0 = arith.constant 0 : index
    %0 = vector.load %arg6[%c0, %c0_0] : memref<1x32xf32, #tpu.memory_space<vmem>>, vector<1x32xf32>
    %c0_1 = arith.constant 0 : index
    %c0_2 = arith.constant 0 : index
    %1 = vector.load %arg7[%c0_1, %c0_2] : memref<1x32xf32, #tpu.memory_space<vmem>>, vector<1x32xf32>
    %c0_3 = arith.constant 0 : index
    %c0_4 = arith.constant 0 : index
    %c0_5 = arith.constant 0 : index
    %c0_6 = arith.constant 0 : index
    %2 = vector.load %arg3[%c0_3, %c0_4, %c0_5, %c0_6] : memref<1x1x8x32xf32, #tpu.memory_space<vmem>>, vector<1x1x8x32xf32>
    %3 = vector.shape_cast %2 : vector<1x1x8x32xf32> to vector<8x32xf32>
    %cst = arith.constant dense<0.000000e+00> : vector<8xf32>
    %4 = vector.multi_reduction <add>, %3, %cst [1] : vector<8x32xf32> to vector<8xf32>
    %5 = vector.shape_cast %4 : vector<8xf32> to vector<8x1xf32>
    %cst_7 = arith.constant 3.200000e+01 : f32
    %6 = vector.broadcast %cst_7 : f32 to vector<8x1xf32>
    %7 = arith.divf %5, %6 : vector<8x1xf32>
    %8 = vector.broadcast %7 : vector<8x1xf32> to vector<8x32xf32>
    %9 = arith.subf %3, %8 : vector<8x32xf32>
    %10 = arith.mulf %9, %9 : vector<8x32xf32>
    %cst_8 = arith.constant dense<0.000000e+00> : vector<8xf32>
    %11 = vector.multi_reduction <add>, %10, %cst_8 [1] : vector<8x32xf32> to vector<8xf32>
    %12 = vector.shape_cast %11 : vector<8xf32> to vector<8x1xf32>
    %cst_9 = arith.constant 3.200000e+01 : f32
    %13 = vector.broadcast %cst_9 : f32 to vector<8x1xf32>
    %14 = arith.divf %12, %13 : vector<8x1xf32>
    %15 = vector.broadcast %7 : vector<8x1xf32> to vector<8x32xf32>
    %16 = arith.subf %3, %15 : vector<8x32xf32>
    %cst_10 = arith.constant 9.99999974E-6 : f32
    %17 = vector.broadcast %cst_10 : f32 to vector<8x1xf32>
    %18 = arith.addf %14, %17 : vector<8x1xf32>
    %19 = math.rsqrt %18 : vector<8x1xf32>
    %20 = vector.broadcast %19 : vector<8x1xf32> to vector<8x32xf32>
    %21 = arith.mulf %16, %20 : vector<8x32xf32>
    %22 = vector.broadcast %0 : vector<1x32xf32> to vector<8x32xf32>
    %23 = arith.mulf %21, %22 : vector<8x32xf32>
    %24 = vector.broadcast %1 : vector<1x32xf32> to vector<8x32xf32>
    %25 = arith.addf %23, %24 : vector<8x32xf32>
    %c0_11 = arith.constant 0 : index
    %c0_12 = arith.constant 0 : index
    %c0_13 = arith.constant 0 : index
    %c0_14 = arith.constant 0 : index
    %26 = vector.load %arg4[%c0_11, %c0_12, %c0_13, %c0_14] : memref<1x1x8x32xf32, #tpu.memory_space<vmem>>, vector<1x1x8x32xf32>
    %27 = vector.shape_cast %26 : vector<1x1x8x32xf32> to vector<8x32xf32>
    %cst_15 = arith.constant dense<0.000000e+00> : vector<8xf32>
    %28 = vector.multi_reduction <add>, %27, %cst_15 [1] : vector<8x32xf32> to vector<8xf32>
    %29 = vector.shape_cast %28 : vector<8xf32> to vector<8x1xf32>
    %cst_16 = arith.constant 3.200000e+01 : f32
    %30 = vector.broadcast %cst_16 : f32 to vector<8x1xf32>
    %31 = arith.divf %29, %30 : vector<8x1xf32>
    %32 = vector.broadcast %31 : vector<8x1xf32> to vector<8x32xf32>
    %33 = arith.subf %27, %32 : vector<8x32xf32>
    %34 = arith.mulf %33, %33 : vector<8x32xf32>
    %cst_17 = arith.constant dense<0.000000e+00> : vector<8xf32>
    %35 = vector.multi_reduction <add>, %34, %cst_17 [1] : vector<8x32xf32> to vector<8xf32>
    %36 = vector.shape_cast %35 : vector<8xf32> to vector<8x1xf32>
    %cst_18 = arith.constant 3.200000e+01 : f32
    %37 = vector.broadcast %cst_18 : f32 to vector<8x1xf32>
    %38 = arith.divf %36, %37 : vector<8x1xf32>
    %39 = vector.broadcast %31 : vector<8x1xf32> to vector<8x32xf32>
    %40 = arith.subf %27, %39 : vector<8x32xf32>
    %cst_19 = arith.constant 9.99999974E-6 : f32
    %41 = vector.broadcast %cst_19 : f32 to vector<8x1xf32>
    %42 = arith.addf %38, %41 : vector<8x1xf32>
    %43 = math.rsqrt %42 : vector<8x1xf32>
    %44 = vector.broadcast %43 : vector<8x1xf32> to vector<8x32xf32>
    %45 = arith.mulf %40, %44 : vector<8x32xf32>
    %46 = vector.broadcast %0 : vector<1x32xf32> to vector<8x32xf32>
    %47 = arith.mulf %45, %46 : vector<8x32xf32>
    %48 = vector.broadcast %1 : vector<1x32xf32> to vector<8x32xf32>
    %49 = arith.addf %47, %48 : vector<8x32xf32>
    %c0_20 = arith.constant 0 : index
    %c0_21 = arith.constant 0 : index
    %c0_22 = arith.constant 0 : index
    %c0_23 = arith.constant 0 : index
    %50 = vector.load %arg5[%c0_20, %c0_21, %c0_22, %c0_23] : memref<1x1x8x32xf32, #tpu.memory_space<vmem>>, vector<1x1x8x32xf32>
    %51 = vector.shape_cast %50 : vector<1x1x8x32xf32> to vector<8x32xf32>
    %cst_24 = arith.constant dense<0.000000e+00> : vector<8xf32>
    %52 = vector.multi_reduction <add>, %51, %cst_24 [1] : vector<8x32xf32> to vector<8xf32>
    %53 = vector.shape_cast %52 : vector<8xf32> to vector<8x1xf32>
    %cst_25 = arith.constant 3.200000e+01 : f32
    %54 = vector.broadcast %cst_25 : f32 to vector<8x1xf32>
    %55 = arith.divf %53, %54 : vector<8x1xf32>
    %56 = vector.broadcast %55 : vector<8x1xf32> to vector<8x32xf32>
    %57 = arith.subf %51, %56 : vector<8x32xf32>
    %58 = arith.mulf %57, %57 : vector<8x32xf32>
    %cst_26 = arith.constant dense<0.000000e+00> : vector<8xf32>
    %59 = vector.multi_reduction <add>, %58, %cst_26 [1] : vector<8x32xf32> to vector<8xf32>
    %60 = vector.shape_cast %59 : vector<8xf32> to vector<8x1xf32>
    %cst_27 = arith.constant 3.200000e+01 : f32
    %61 = vector.broadcast %cst_27 : f32 to vector<8x1xf32>
    %62 = arith.divf %60, %61 : vector<8x1xf32>
    %63 = vector.broadcast %55 : vector<8x1xf32> to vector<8x32xf32>
    %64 = arith.subf %51, %63 : vector<8x32xf32>
    %cst_28 = arith.constant 9.99999974E-6 : f32
    %65 = vector.broadcast %cst_28 : f32 to vector<8x1xf32>
    %66 = arith.addf %62, %65 : vector<8x1xf32>
    %67 = math.rsqrt %66 : vector<8x1xf32>
    %68 = vector.broadcast %67 : vector<8x1xf32> to vector<8x32xf32>
    %69 = arith.mulf %64, %68 : vector<8x32xf32>
    %70 = vector.broadcast %0 : vector<1x32xf32> to vector<8x32xf32>
    %71 = arith.mulf %69, %70 : vector<8x32xf32>
    %72 = vector.broadcast %1 : vector<1x32xf32> to vector<8x32xf32>
    %73 = arith.addf %71, %72 : vector<8x32xf32>
    %c0_i32 = arith.constant 0 : i32
    %74 = arith.cmpi eq, %arg1, %c0_i32 : i32
    %c1_i32 = arith.constant 1 : i32
    %c0_i32_29 = arith.constant 0 : i32
    %75 = arith.select %74, %c1_i32, %c0_i32_29 : i32
    %c2_i32 = arith.constant 2 : i32
    %76 = arith.cmpi eq, %arg1, %c2_i32 : i32
    %c1_i32_30 = arith.constant 1 : i32
    %c2_i32_31 = arith.constant 2 : i32
    %77 = arith.select %76, %c1_i32_30, %c2_i32_31 : i32
    %78 = arith.index_cast %arg0 : i32 to index
    %79 = arith.index_cast %arg1 : i32 to index
    %80 = memref.load %arg2[%78, %79] : memref<2x3xi32, #tpu.memory_space<smem>>
    %81 = arith.sitofp %80 : i32 to f32
    %82 = arith.index_cast %arg0 : i32 to index
    %83 = arith.index_cast %75 : i32 to index
    %84 = memref.load %arg2[%82, %83] : memref<2x3xi32, #tpu.memory_space<smem>>
    %85 = arith.sitofp %84 : i32 to f32
    %86 = arith.index_cast %arg0 : i32 to index
    %87 = arith.index_cast %77 : i32 to index
    %88 = memref.load %arg2[%86, %87] : memref<2x3xi32, #tpu.memory_space<smem>>
    %89 = arith.sitofp %88 : i32 to f32
    %cst_32 = arith.constant 1.000000e+00 : f32
    %90 = arith.divf %cst_32, %81 : f32
    %cst_33 = arith.constant dense<0.000000e+00> : vector<32xf32>
    %91 = vector.multi_reduction <add>, %49, %cst_33 [0] : vector<8x32xf32> to vector<32xf32>
    %92 = vector.shape_cast %91 : vector<32xf32> to vector<1x32xf32>
    %93 = vector.broadcast %85 : f32 to vector<1x32xf32>
    %94 = arith.divf %92, %93 : vector<1x32xf32>
    %cst_34 = arith.constant dense<0.000000e+00> : vector<32xf32>
    %95 = vector.multi_reduction <add>, %73, %cst_34 [0] : vector<8x32xf32> to vector<32xf32>
    %96 = vector.shape_cast %95 : vector<32xf32> to vector<1x32xf32>
    %97 = vector.broadcast %89 : f32 to vector<1x32xf32>
    %98 = arith.divf %96, %97 : vector<1x32xf32>
    %cst_35 = arith.constant dense<0.000000e+00> : vector<32xf32>
    %99 = vector.multi_reduction <add>, %25, %cst_35 [0] : vector<8x32xf32> to vector<32xf32>
    %100 = vector.shape_cast %99 : vector<32xf32> to vector<1x32xf32>
    %101 = vector.broadcast %90 : f32 to vector<1x32xf32>
    %102 = arith.mulf %100, %101 : vector<1x32xf32>
    %c0_36 = arith.constant 0 : index
    %c0_37 = arith.constant 0 : index
    %c0_38 = arith.constant 0 : index
    %c0_39 = arith.constant 0 : index
    %103 = vector.load %arg8[%c0_36, %c0_37, %c0_38, %c0_39] : memref<1x3x32x64xf32, #tpu.memory_space<vmem>>, vector<1x1x32x64xf32>
    %104 = vector.shape_cast %103 : vector<1x1x32x64xf32> to vector<32x64xf32>
    %cst_40 = arith.constant dense<0.000000e+00> : vector<1x64xf32>
    %105 = tpu.matmul %94, %104, %cst_40 {dimension_numbers = #tpu.dot_dimension_numbers<[1], [0], [0], [1], [0, 0, 1, 1], [], []>} : vector<1x32xf32>, vector<32x64xf32>, vector<1x64xf32> -> vector<1x64xf32>
    %c0_41 = arith.constant 0 : index
    %c0_42 = arith.constant 0 : index
    %c0_43 = arith.constant 0 : index
    %c0_44 = arith.constant 0 : index
    %106 = vector.load %arg9[%c0_41, %c0_42, %c0_43, %c0_44] : memref<1x3x1x64xf32, #tpu.memory_space<vmem>>, vector<1x1x1x64xf32>
    %107 = vector.shape_cast %106 : vector<1x1x1x64xf32> to vector<1x64xf32>
    %108 = arith.addf %105, %107 : vector<1x64xf32>
    %cst_45 = arith.constant 5.000000e-01 : f32
    %109 = vector.broadcast %cst_45 : f32 to vector<1x64xf32>
    %110 = arith.mulf %109, %108 : vector<1x64xf32>
    %cst_46 = arith.constant 0.707106769 : f32
    %111 = vector.broadcast %cst_46 : f32 to vector<1x64xf32>
    %112 = arith.mulf %108, %111 : vector<1x64xf32>
    %cst_47 = arith.constant 0.000000e+00 : f32
    %113 = vector.broadcast %cst_47 : f32 to vector<1x64xf32>
    %114 = arith.cmpf oge, %112, %113 : vector<1x64xf32>
    %cst_48 = arith.constant 1.000000e+00 : f32
    %cst_49 = arith.constant -1.000000e+00 : f32
    %115 = vector.broadcast %cst_48 : f32 to vector<1x64xf32>
    %116 = vector.broadcast %cst_49 : f32 to vector<1x64xf32>
    %117 = arith.select %114, %115, %116 : vector<1x64xi1>, vector<1x64xf32>
    %118 = math.absf %112 : vector<1x64xf32>
    %cst_50 = arith.constant 0.327591091 : f32
    %119 = vector.broadcast %cst_50 : f32 to vector<1x64xf32>
    %120 = arith.mulf %119, %118 : vector<1x64xf32>
    %cst_51 = arith.constant 1.000000e+00 : f32
    %121 = vector.broadcast %cst_51 : f32 to vector<1x64xf32>
    %122 = arith.addf %121, %120 : vector<1x64xf32>
    %cst_52 = arith.constant 1.000000e+00 : f32
    %123 = vector.broadcast %cst_52 : f32 to vector<1x64xf32>
    %124 = arith.divf %123, %122 : vector<1x64xf32>
    %cst_53 = arith.constant 1.06140542 : f32
    %125 = vector.broadcast %cst_53 : f32 to vector<1x64xf32>
    %126 = arith.mulf %125, %124 : vector<1x64xf32>
    %cst_54 = arith.constant -1.45315206 : f32
    %127 = vector.broadcast %cst_54 : f32 to vector<1x64xf32>
    %128 = arith.addf %126, %127 : vector<1x64xf32>
    %129 = arith.mulf %128, %124 : vector<1x64xf32>
    %cst_55 = arith.constant 1.42141378 : f32
    %130 = vector.broadcast %cst_55 : f32 to vector<1x64xf32>
    %131 = arith.addf %129, %130 : vector<1x64xf32>
    %132 = arith.mulf %131, %124 : vector<1x64xf32>
    %cst_56 = arith.constant -0.284496725 : f32
    %133 = vector.broadcast %cst_56 : f32 to vector<1x64xf32>
    %134 = arith.addf %132, %133 : vector<1x64xf32>
    %135 = arith.mulf %134, %124 : vector<1x64xf32>
    %cst_57 = arith.constant 0.254829586 : f32
    %136 = vector.broadcast %cst_57 : f32 to vector<1x64xf32>
    %137 = arith.addf %135, %136 : vector<1x64xf32>
    %138 = arith.mulf %137, %124 : vector<1x64xf32>
    %cst_58 = arith.constant 0.000000e+00 : f32
    %139 = vector.broadcast %cst_58 : f32 to vector<1x64xf32>
    %140 = arith.subf %139, %118 : vector<1x64xf32>
    %141 = arith.mulf %140, %118 : vector<1x64xf32>
    %142 = math.exp %141 : vector<1x64xf32>
    %143 = arith.mulf %138, %142 : vector<1x64xf32>
    %cst_59 = arith.constant 1.000000e+00 : f32
    %144 = vector.broadcast %cst_59 : f32 to vector<1x64xf32>
    %145 = arith.subf %144, %143 : vector<1x64xf32>
    %146 = arith.mulf %117, %145 : vector<1x64xf32>
    %cst_60 = arith.constant 1.000000e+00 : f32
    %147 = vector.broadcast %cst_60 : f32 to vector<1x64xf32>
    %148 = arith.addf %147, %146 : vector<1x64xf32>
    %149 = arith.mulf %110, %148 : vector<1x64xf32>
    %150 = vector.extract_strided_slice %149 {offsets = [0, 0], sizes = [1, 32], strides = [1, 1]} : vector<1x64xf32> to vector<1x32xf32>
    %c0_61 = arith.constant 0 : index
    %c0_62 = arith.constant 0 : index
    %c0_63 = arith.constant 0 : index
    %c0_64 = arith.constant 0 : index
    %151 = vector.load %arg10[%c0_61, %c0_62, %c0_63, %c0_64] : memref<1x6x32x32xf32, #tpu.memory_space<vmem>>, vector<1x1x32x32xf32>
    %152 = vector.shape_cast %151 : vector<1x1x32x32xf32> to vector<32x32xf32>
    %cst_65 = arith.constant dense<0.000000e+00> : vector<1x32xf32>
    %153 = tpu.matmul %150, %152, %cst_65 {dimension_numbers = #tpu.dot_dimension_numbers<[1], [0], [0], [1], [0, 0, 1, 1], [], []>} : vector<1x32xf32>, vector<32x32xf32>, vector<1x32xf32> -> vector<1x32xf32>
    %c0_66 = arith.constant 0 : index
    %c0_67 = arith.constant 0 : index
    %c0_68 = arith.constant 0 : index
    %c0_69 = arith.constant 0 : index
    %154 = vector.load %arg11[%c0_66, %c0_67, %c0_68, %c0_69] : memref<1x6x1x32xf32, #tpu.memory_space<vmem>>, vector<1x1x1x32xf32>
    %155 = vector.shape_cast %154 : vector<1x1x1x32xf32> to vector<1x32xf32>
    %156 = arith.addf %153, %155 : vector<1x32xf32>
    %157 = vector.extract_strided_slice %149 {offsets = [0, 32], sizes = [1, 32], strides = [1, 1]} : vector<1x64xf32> to vector<1x32xf32>
    %c0_70 = arith.constant 0 : index
    %c1 = arith.constant 1 : index
    %c0_71 = arith.constant 0 : index
    %c0_72 = arith.constant 0 : index
    %158 = vector.load %arg10[%c0_70, %c1, %c0_71, %c0_72] : memref<1x6x32x32xf32, #tpu.memory_space<vmem>>, vector<1x1x32x32xf32>
    %159 = vector.shape_cast %158 : vector<1x1x32x32xf32> to vector<32x32xf32>
    %cst_73 = arith.constant dense<0.000000e+00> : vector<1x32xf32>
    %160 = tpu.matmul %157, %159, %cst_73 {dimension_numbers = #tpu.dot_dimension_numbers<[1], [0], [0], [1], [0, 0, 1, 1], [], []>} : vector<1x32xf32>, vector<32x32xf32>, vector<1x32xf32> -> vector<1x32xf32>
    %c0_74 = arith.constant 0 : index
    %c1_75 = arith.constant 1 : index
    %c0_76 = arith.constant 0 : index
    %c0_77 = arith.constant 0 : index
    %161 = vector.load %arg11[%c0_74, %c1_75, %c0_76, %c0_77] : memref<1x6x1x32xf32, #tpu.memory_space<vmem>>, vector<1x1x1x32xf32>
    %162 = vector.shape_cast %161 : vector<1x1x1x32xf32> to vector<1x32xf32>
    %163 = arith.addf %160, %162 : vector<1x32xf32>
    %c0_78 = arith.constant 0 : index
    %c1_79 = arith.constant 1 : index
    %c0_80 = arith.constant 0 : index
    %c0_81 = arith.constant 0 : index
    %164 = vector.load %arg8[%c0_78, %c1_79, %c0_80, %c0_81] : memref<1x3x32x64xf32, #tpu.memory_space<vmem>>, vector<1x1x32x64xf32>
    %165 = vector.shape_cast %164 : vector<1x1x32x64xf32> to vector<32x64xf32>
    %cst_82 = arith.constant dense<0.000000e+00> : vector<1x64xf32>
    %166 = tpu.matmul %98, %165, %cst_82 {dimension_numbers = #tpu.dot_dimension_numbers<[1], [0], [0], [1], [0, 0, 1, 1], [], []>} : vector<1x32xf32>, vector<32x64xf32>, vector<1x64xf32> -> vector<1x64xf32>
    %c0_83 = arith.constant 0 : index
    %c1_84 = arith.constant 1 : index
    %c0_85 = arith.constant 0 : index
    %c0_86 = arith.constant 0 : index
    %167 = vector.load %arg9[%c0_83, %c1_84, %c0_85, %c0_86] : memref<1x3x1x64xf32, #tpu.memory_space<vmem>>, vector<1x1x1x64xf32>
    %168 = vector.shape_cast %167 : vector<1x1x1x64xf32> to vector<1x64xf32>
    %169 = arith.addf %166, %168 : vector<1x64xf32>
    %cst_87 = arith.constant 5.000000e-01 : f32
    %170 = vector.broadcast %cst_87 : f32 to vector<1x64xf32>
    %171 = arith.mulf %170, %169 : vector<1x64xf32>
    %cst_88 = arith.constant 0.707106769 : f32
    %172 = vector.broadcast %cst_88 : f32 to vector<1x64xf32>
    %173 = arith.mulf %169, %172 : vector<1x64xf32>
    %cst_89 = arith.constant 0.000000e+00 : f32
    %174 = vector.broadcast %cst_89 : f32 to vector<1x64xf32>
    %175 = arith.cmpf oge, %173, %174 : vector<1x64xf32>
    %cst_90 = arith.constant 1.000000e+00 : f32
    %cst_91 = arith.constant -1.000000e+00 : f32
    %176 = vector.broadcast %cst_90 : f32 to vector<1x64xf32>
    %177 = vector.broadcast %cst_91 : f32 to vector<1x64xf32>
    %178 = arith.select %175, %176, %177 : vector<1x64xi1>, vector<1x64xf32>
    %179 = math.absf %173 : vector<1x64xf32>
    %cst_92 = arith.constant 0.327591091 : f32
    %180 = vector.broadcast %cst_92 : f32 to vector<1x64xf32>
    %181 = arith.mulf %180, %179 : vector<1x64xf32>
    %cst_93 = arith.constant 1.000000e+00 : f32
    %182 = vector.broadcast %cst_93 : f32 to vector<1x64xf32>
    %183 = arith.addf %182, %181 : vector<1x64xf32>
    %cst_94 = arith.constant 1.000000e+00 : f32
    %184 = vector.broadcast %cst_94 : f32 to vector<1x64xf32>
    %185 = arith.divf %184, %183 : vector<1x64xf32>
    %cst_95 = arith.constant 1.06140542 : f32
    %186 = vector.broadcast %cst_95 : f32 to vector<1x64xf32>
    %187 = arith.mulf %186, %185 : vector<1x64xf32>
    %cst_96 = arith.constant -1.45315206 : f32
    %188 = vector.broadcast %cst_96 : f32 to vector<1x64xf32>
    %189 = arith.addf %187, %188 : vector<1x64xf32>
    %190 = arith.mulf %189, %185 : vector<1x64xf32>
    %cst_97 = arith.constant 1.42141378 : f32
    %191 = vector.broadcast %cst_97 : f32 to vector<1x64xf32>
    %192 = arith.addf %190, %191 : vector<1x64xf32>
    %193 = arith.mulf %192, %185 : vector<1x64xf32>
    %cst_98 = arith.constant -0.284496725 : f32
    %194 = vector.broadcast %cst_98 : f32 to vector<1x64xf32>
    %195 = arith.addf %193, %194 : vector<1x64xf32>
    %196 = arith.mulf %195, %185 : vector<1x64xf32>
    %cst_99 = arith.constant 0.254829586 : f32
    %197 = vector.broadcast %cst_99 : f32 to vector<1x64xf32>
    %198 = arith.addf %196, %197 : vector<1x64xf32>
    %199 = arith.mulf %198, %185 : vector<1x64xf32>
    %cst_100 = arith.constant 0.000000e+00 : f32
    %200 = vector.broadcast %cst_100 : f32 to vector<1x64xf32>
    %201 = arith.subf %200, %179 : vector<1x64xf32>
    %202 = arith.mulf %201, %179 : vector<1x64xf32>
    %203 = math.exp %202 : vector<1x64xf32>
    %204 = arith.mulf %199, %203 : vector<1x64xf32>
    %cst_101 = arith.constant 1.000000e+00 : f32
    %205 = vector.broadcast %cst_101 : f32 to vector<1x64xf32>
    %206 = arith.subf %205, %204 : vector<1x64xf32>
    %207 = arith.mulf %178, %206 : vector<1x64xf32>
    %cst_102 = arith.constant 1.000000e+00 : f32
    %208 = vector.broadcast %cst_102 : f32 to vector<1x64xf32>
    %209 = arith.addf %208, %207 : vector<1x64xf32>
    %210 = arith.mulf %171, %209 : vector<1x64xf32>
    %211 = vector.extract_strided_slice %210 {offsets = [0, 0], sizes = [1, 32], strides = [1, 1]} : vector<1x64xf32> to vector<1x32xf32>
    %c0_103 = arith.constant 0 : index
    %c2 = arith.constant 2 : index
    %c0_104 = arith.constant 0 : index
    %c0_105 = arith.constant 0 : index
    %212 = vector.load %arg10[%c0_103, %c2, %c0_104, %c0_105] : memref<1x6x32x32xf32, #tpu.memory_space<vmem>>, vector<1x1x32x32xf32>
    %213 = vector.shape_cast %212 : vector<1x1x32x32xf32> to vector<32x32xf32>
    %cst_106 = arith.constant dense<0.000000e+00> : vector<1x32xf32>
    %214 = tpu.matmul %211, %213, %cst_106 {dimension_numbers = #tpu.dot_dimension_numbers<[1], [0], [0], [1], [0, 0, 1, 1], [], []>} : vector<1x32xf32>, vector<32x32xf32>, vector<1x32xf32> -> vector<1x32xf32>
    %c0_107 = arith.constant 0 : index
    %c2_108 = arith.constant 2 : index
    %c0_109 = arith.constant 0 : index
    %c0_110 = arith.constant 0 : index
    %215 = vector.load %arg11[%c0_107, %c2_108, %c0_109, %c0_110] : memref<1x6x1x32xf32, #tpu.memory_space<vmem>>, vector<1x1x1x32xf32>
    %216 = vector.shape_cast %215 : vector<1x1x1x32xf32> to vector<1x32xf32>
    %217 = arith.addf %214, %216 : vector<1x32xf32>
    %218 = vector.extract_strided_slice %210 {offsets = [0, 32], sizes = [1, 32], strides = [1, 1]} : vector<1x64xf32> to vector<1x32xf32>
    %c0_111 = arith.constant 0 : index
    %c3 = arith.constant 3 : index
    %c0_112 = arith.constant 0 : index
    %c0_113 = arith.constant 0 : index
    %219 = vector.load %arg10[%c0_111, %c3, %c0_112, %c0_113] : memref<1x6x32x32xf32, #tpu.memory_space<vmem>>, vector<1x1x32x32xf32>
    %220 = vector.shape_cast %219 : vector<1x1x32x32xf32> to vector<32x32xf32>
    %cst_114 = arith.constant dense<0.000000e+00> : vector<1x32xf32>
    %221 = tpu.matmul %218, %220, %cst_114 {dimension_numbers = #tpu.dot_dimension_numbers<[1], [0], [0], [1], [0, 0, 1, 1], [], []>} : vector<1x32xf32>, vector<32x32xf32>, vector<1x32xf32> -> vector<1x32xf32>
    %c0_115 = arith.constant 0 : index
    %c3_116 = arith.constant 3 : index
    %c0_117 = arith.constant 0 : index
    %c0_118 = arith.constant 0 : index
    %222 = vector.load %arg11[%c0_115, %c3_116, %c0_117, %c0_118] : memref<1x6x1x32xf32, #tpu.memory_space<vmem>>, vector<1x1x1x32xf32>
    %223 = vector.shape_cast %222 : vector<1x1x1x32xf32> to vector<1x32xf32>
    %224 = arith.addf %221, %223 : vector<1x32xf32>
    %c0_119 = arith.constant 0 : index
    %c2_120 = arith.constant 2 : index
    %c0_121 = arith.constant 0 : index
    %c0_122 = arith.constant 0 : index
    %225 = vector.load %arg8[%c0_119, %c2_120, %c0_121, %c0_122] : memref<1x3x32x64xf32, #tpu.memory_space<vmem>>, vector<1x1x32x64xf32>
    %226 = vector.shape_cast %225 : vector<1x1x32x64xf32> to vector<32x64xf32>
    %cst_123 = arith.constant dense<0.000000e+00> : vector<1x64xf32>
    %227 = tpu.matmul %102, %226, %cst_123 {dimension_numbers = #tpu.dot_dimension_numbers<[1], [0], [0], [1], [0, 0, 1, 1], [], []>} : vector<1x32xf32>, vector<32x64xf32>, vector<1x64xf32> -> vector<1x64xf32>
    %c0_124 = arith.constant 0 : index
    %c2_125 = arith.constant 2 : index
    %c0_126 = arith.constant 0 : index
    %c0_127 = arith.constant 0 : index
    %228 = vector.load %arg9[%c0_124, %c2_125, %c0_126, %c0_127] : memref<1x3x1x64xf32, #tpu.memory_space<vmem>>, vector<1x1x1x64xf32>
    %229 = vector.shape_cast %228 : vector<1x1x1x64xf32> to vector<1x64xf32>
    %230 = arith.addf %227, %229 : vector<1x64xf32>
    %cst_128 = arith.constant 5.000000e-01 : f32
    %231 = vector.broadcast %cst_128 : f32 to vector<1x64xf32>
    %232 = arith.mulf %231, %230 : vector<1x64xf32>
    %cst_129 = arith.constant 0.707106769 : f32
    %233 = vector.broadcast %cst_129 : f32 to vector<1x64xf32>
    %234 = arith.mulf %230, %233 : vector<1x64xf32>
    %cst_130 = arith.constant 0.000000e+00 : f32
    %235 = vector.broadcast %cst_130 : f32 to vector<1x64xf32>
    %236 = arith.cmpf oge, %234, %235 : vector<1x64xf32>
    %cst_131 = arith.constant 1.000000e+00 : f32
    %cst_132 = arith.constant -1.000000e+00 : f32
    %237 = vector.broadcast %cst_131 : f32 to vector<1x64xf32>
    %238 = vector.broadcast %cst_132 : f32 to vector<1x64xf32>
    %239 = arith.select %236, %237, %238 : vector<1x64xi1>, vector<1x64xf32>
    %240 = math.absf %234 : vector<1x64xf32>
    %cst_133 = arith.constant 0.327591091 : f32
    %241 = vector.broadcast %cst_133 : f32 to vector<1x64xf32>
    %242 = arith.mulf %241, %240 : vector<1x64xf32>
    %cst_134 = arith.constant 1.000000e+00 : f32
    %243 = vector.broadcast %cst_134 : f32 to vector<1x64xf32>
    %244 = arith.addf %243, %242 : vector<1x64xf32>
    %cst_135 = arith.constant 1.000000e+00 : f32
    %245 = vector.broadcast %cst_135 : f32 to vector<1x64xf32>
    %246 = arith.divf %245, %244 : vector<1x64xf32>
    %cst_136 = arith.constant 1.06140542 : f32
    %247 = vector.broadcast %cst_136 : f32 to vector<1x64xf32>
    %248 = arith.mulf %247, %246 : vector<1x64xf32>
    %cst_137 = arith.constant -1.45315206 : f32
    %249 = vector.broadcast %cst_137 : f32 to vector<1x64xf32>
    %250 = arith.addf %248, %249 : vector<1x64xf32>
    %251 = arith.mulf %250, %246 : vector<1x64xf32>
    %cst_138 = arith.constant 1.42141378 : f32
    %252 = vector.broadcast %cst_138 : f32 to vector<1x64xf32>
    %253 = arith.addf %251, %252 : vector<1x64xf32>
    %254 = arith.mulf %253, %246 : vector<1x64xf32>
    %cst_139 = arith.constant -0.284496725 : f32
    %255 = vector.broadcast %cst_139 : f32 to vector<1x64xf32>
    %256 = arith.addf %254, %255 : vector<1x64xf32>
    %257 = arith.mulf %256, %246 : vector<1x64xf32>
    %cst_140 = arith.constant 0.254829586 : f32
    %258 = vector.broadcast %cst_140 : f32 to vector<1x64xf32>
    %259 = arith.addf %257, %258 : vector<1x64xf32>
    %260 = arith.mulf %259, %246 : vector<1x64xf32>
    %cst_141 = arith.constant 0.000000e+00 : f32
    %261 = vector.broadcast %cst_141 : f32 to vector<1x64xf32>
    %262 = arith.subf %261, %240 : vector<1x64xf32>
    %263 = arith.mulf %262, %240 : vector<1x64xf32>
    %264 = math.exp %263 : vector<1x64xf32>
    %265 = arith.mulf %260, %264 : vector<1x64xf32>
    %cst_142 = arith.constant 1.000000e+00 : f32
    %266 = vector.broadcast %cst_142 : f32 to vector<1x64xf32>
    %267 = arith.subf %266, %265 : vector<1x64xf32>
    %268 = arith.mulf %239, %267 : vector<1x64xf32>
    %cst_143 = arith.constant 1.000000e+00 : f32
    %269 = vector.broadcast %cst_143 : f32 to vector<1x64xf32>
    %270 = arith.addf %269, %268 : vector<1x64xf32>
    %271 = arith.mulf %232, %270 : vector<1x64xf32>
    %272 = vector.extract_strided_slice %271 {offsets = [0, 0], sizes = [1, 32], strides = [1, 1]} : vector<1x64xf32> to vector<1x32xf32>
    %c0_144 = arith.constant 0 : index
    %c4 = arith.constant 4 : index
    %c0_145 = arith.constant 0 : index
    %c0_146 = arith.constant 0 : index
    %273 = vector.load %arg10[%c0_144, %c4, %c0_145, %c0_146] : memref<1x6x32x32xf32, #tpu.memory_space<vmem>>, vector<1x1x32x32xf32>
    %274 = vector.shape_cast %273 : vector<1x1x32x32xf32> to vector<32x32xf32>
    %cst_147 = arith.constant dense<0.000000e+00> : vector<1x32xf32>
    %275 = tpu.matmul %272, %274, %cst_147 {dimension_numbers = #tpu.dot_dimension_numbers<[1], [0], [0], [1], [0, 0, 1, 1], [], []>} : vector<1x32xf32>, vector<32x32xf32>, vector<1x32xf32> -> vector<1x32xf32>
    %c0_148 = arith.constant 0 : index
    %c4_149 = arith.constant 4 : index
    %c0_150 = arith.constant 0 : index
    %c0_151 = arith.constant 0 : index
    %276 = vector.load %arg11[%c0_148, %c4_149, %c0_150, %c0_151] : memref<1x6x1x32xf32, #tpu.memory_space<vmem>>, vector<1x1x1x32xf32>
    %277 = vector.shape_cast %276 : vector<1x1x1x32xf32> to vector<1x32xf32>
    %278 = arith.addf %275, %277 : vector<1x32xf32>
    %279 = vector.extract_strided_slice %271 {offsets = [0, 32], sizes = [1, 32], strides = [1, 1]} : vector<1x64xf32> to vector<1x32xf32>
    %c0_152 = arith.constant 0 : index
    %c5 = arith.constant 5 : index
    %c0_153 = arith.constant 0 : index
    %c0_154 = arith.constant 0 : index
    %280 = vector.load %arg10[%c0_152, %c5, %c0_153, %c0_154] : memref<1x6x32x32xf32, #tpu.memory_space<vmem>>, vector<1x1x32x32xf32>
    %281 = vector.shape_cast %280 : vector<1x1x32x32xf32> to vector<32x32xf32>
    %cst_155 = arith.constant dense<0.000000e+00> : vector<1x32xf32>
    %282 = tpu.matmul %279, %281, %cst_155 {dimension_numbers = #tpu.dot_dimension_numbers<[1], [0], [0], [1], [0, 0, 1, 1], [], []>} : vector<1x32xf32>, vector<32x32xf32>, vector<1x32xf32> -> vector<1x32xf32>
    %c0_156 = arith.constant 0 : index
    %c5_157 = arith.constant 5 : index
    %c0_158 = arith.constant 0 : index
    %c0_159 = arith.constant 0 : index
    %283 = vector.load %arg11[%c0_156, %c5_157, %c0_158, %c0_159] : memref<1x6x1x32xf32, #tpu.memory_space<vmem>>, vector<1x1x1x32xf32>
    %284 = vector.shape_cast %283 : vector<1x1x1x32xf32> to vector<1x32xf32>
    %285 = arith.addf %282, %284 : vector<1x32xf32>
    %286 = arith.addf %156, %217 : vector<1x32xf32>
    %cst_160 = arith.constant 5.000000e-01 : f32
    %287 = vector.broadcast %cst_160 : f32 to vector<1x32xf32>
    %288 = arith.mulf %287, %286 : vector<1x32xf32>
    %cst_161 = arith.constant 2.000000e+00 : f32
    %289 = vector.broadcast %cst_161 : f32 to vector<1x32xf32>
    %290 = arith.addf %289, %288 : vector<1x32xf32>
    %291 = arith.addf %290, %278 : vector<1x32xf32>
    %292 = arith.addf %163, %224 : vector<1x32xf32>
    %cst_162 = arith.constant 5.000000e-01 : f32
    %293 = vector.broadcast %cst_162 : f32 to vector<1x32xf32>
    %294 = arith.mulf %293, %292 : vector<1x32xf32>
    %295 = arith.addf %294, %285 : vector<1x32xf32>
    %296 = tpu.iota {dimensions = array<i32: 0>} : vector<8x1xi32>
    %297 = arith.sitofp %296 : vector<8x1xi32> to vector<8x1xf32>
    %298 = tpu.iota {dimensions = array<i32: 1>} : vector<1x8xi32>
    %299 = arith.sitofp %298 : vector<1x8xi32> to vector<1x8xf32>
    %300 = vector.broadcast %81 : f32 to vector<8x1xf32>
    %301 = arith.cmpf olt, %297, %300 : vector<8x1xf32>
    %302 = arith.extui %301 : vector<8x1xi1> to vector<8x1xi32>
    %303 = arith.sitofp %302 : vector<8x1xi32> to vector<8x1xf32>
    %304 = vector.broadcast %297 : vector<8x1xf32> to vector<8x8xf32>
    %305 = vector.broadcast %299 : vector<1x8xf32> to vector<8x8xf32>
    %306 = arith.mulf %304, %305 : vector<8x8xf32>
    %307 = vector.broadcast %90 : f32 to vector<8x8xf32>
    %308 = arith.mulf %306, %307 : vector<8x8xf32>
    %309 = math.floor %308 : vector<8x8xf32>
    %310 = vector.broadcast %81 : f32 to vector<8x8xf32>
    %311 = arith.mulf %309, %310 : vector<8x8xf32>
    %312 = arith.subf %306, %311 : vector<8x8xf32>
    %cst_163 = arith.constant 6.28318548 : f32
    %313 = arith.mulf %cst_163, %90 : f32
    %314 = vector.broadcast %313 : f32 to vector<8x8xf32>
    %315 = arith.mulf %314, %312 : vector<8x8xf32>
    %316 = math.cos %315 : vector<8x8xf32>
    %317 = arith.truncf %316 : vector<8x8xf32> to vector<8x8xbf16>
    %318 = math.sin %315 : vector<8x8xf32>
    %319 = arith.truncf %318 : vector<8x8xf32> to vector<8x8xbf16>
    %320 = vector.broadcast %303 : vector<8x1xf32> to vector<8x32xf32>
    %321 = arith.mulf %25, %320 : vector<8x32xf32>
    %322 = arith.truncf %321 : vector<8x32xf32> to vector<8x32xbf16>
    %cst_164 = arith.constant dense<0.000000e+00> : vector<8x32xf32>
    %323 = tpu.matmul %317, %322, %cst_164 {dimension_numbers = #tpu.dot_dimension_numbers<[1], [0], [0], [1], [0, 0, 1, 1], [], []>} : vector<8x8xbf16>, vector<8x32xbf16>, vector<8x32xf32> -> vector<8x32xf32>
    %cst_165 = arith.constant dense<0.000000e+00> : vector<8x32xf32>
    %324 = tpu.matmul %319, %322, %cst_165 {dimension_numbers = #tpu.dot_dimension_numbers<[1], [0], [0], [1], [0, 0, 1, 1], [], []>} : vector<8x8xbf16>, vector<8x32xbf16>, vector<8x32xf32> -> vector<8x32xf32>
    %325 = vector.broadcast %291 : vector<1x32xf32> to vector<8x32xf32>
    %326 = arith.mulf %323, %325 : vector<8x32xf32>
    %327 = vector.broadcast %295 : vector<1x32xf32> to vector<8x32xf32>
    %328 = arith.addf %326, %327 : vector<8x32xf32>
    %329 = vector.broadcast %303 : vector<8x1xf32> to vector<8x32xf32>
    %330 = arith.mulf %328, %329 : vector<8x32xf32>
    %331 = arith.truncf %330 : vector<8x32xf32> to vector<8x32xbf16>
    %332 = vector.broadcast %291 : vector<1x32xf32> to vector<8x32xf32>
    %333 = arith.mulf %324, %332 : vector<8x32xf32>
    %334 = vector.broadcast %303 : vector<8x1xf32> to vector<8x32xf32>
    %335 = arith.mulf %333, %334 : vector<8x32xf32>
    %336 = arith.truncf %335 : vector<8x32xf32> to vector<8x32xbf16>
    %cst_166 = arith.constant dense<0.000000e+00> : vector<8x32xf32>
    %337 = tpu.matmul %317, %331, %cst_166 {dimension_numbers = #tpu.dot_dimension_numbers<[1], [0], [0], [1], [0, 0, 1, 1], [], []>} : vector<8x8xbf16>, vector<8x32xbf16>, vector<8x32xf32> -> vector<8x32xf32>
    %cst_167 = arith.constant dense<0.000000e+00> : vector<8x32xf32>
    %338 = tpu.matmul %319, %336, %cst_167 {dimension_numbers = #tpu.dot_dimension_numbers<[1], [0], [0], [1], [0, 0, 1, 1], [], []>} : vector<8x8xbf16>, vector<8x32xbf16>, vector<8x32xf32> -> vector<8x32xf32>
    %339 = arith.addf %337, %338 : vector<8x32xf32>
    %340 = vector.broadcast %90 : f32 to vector<8x1xf32>
    %341 = arith.mulf %340, %303 : vector<8x1xf32>
    %342 = vector.broadcast %341 : vector<8x1xf32> to vector<8x32xf32>
    %343 = arith.mulf %339, %342 : vector<8x32xf32>
    %344 = arith.addf %343, %3 : vector<8x32xf32>
    %c0_168 = arith.constant 0 : index
    %c0_169 = arith.constant 0 : index
    %c0_170 = arith.constant 0 : index
    %c0_171 = arith.constant 0 : index
    %345 = vector.load %arg12[%c0_168, %c0_169, %c0_170, %c0_171] : memref<1x1x8x32xf32, #tpu.memory_space<vmem>>, vector<1x1x8x32xf32>
    %346 = vector.shape_cast %345 : vector<1x1x8x32xf32> to vector<8x32xf32>
    %347 = vector.shape_cast %344 : vector<8x32xf32> to vector<1x1x8x32xf32>
    tpu.vector_store %arg12[%c0_168, %c0_169, %c0_170, %c0_171], %347 {strides = array<i32>} : memref<1x1x8x32xf32, #tpu.memory_space<vmem>>, vector<1x1x8x32xf32>,
    return
  }
  func.func @transform_0(%arg0: i32, %arg1: i32, %arg2: memref<2x3xi32, #tpu.memory_space<smem>>) -> (i32, i32, i32, i32) {
    %c0_i32 = arith.constant 0 : i32
    %c0_i32_0 = arith.constant 0 : i32
    %c0_i32_1 = arith.constant 0 : i32
    return %arg1, %arg0, %c0_i32, %c0_i32_0 : i32, i32, i32, i32
  }
  func.func @transform_1(%arg0: i32, %arg1: i32, %arg2: memref<2x3xi32, #tpu.memory_space<smem>>) -> (i32, i32, i32, i32) {
    %c0_i32 = arith.constant 0 : i32
    %0 = arith.cmpi eq, %arg1, %c0_i32 : i32
    %c1_i32 = arith.constant 1 : i32
    %c0_i32_0 = arith.constant 0 : i32
    %1 = arith.select %0, %c1_i32, %c0_i32_0 : i32
    %c0_i32_1 = arith.constant 0 : i32
    %c0_i32_2 = arith.constant 0 : i32
    %c0_i32_3 = arith.constant 0 : i32
    return %1, %arg0, %c0_i32_1, %c0_i32_2 : i32, i32, i32, i32
  }
  func.func @transform_2(%arg0: i32, %arg1: i32, %arg2: memref<2x3xi32, #tpu.memory_space<smem>>) -> (i32, i32, i32, i32) {
    %c2_i32 = arith.constant 2 : i32
    %0 = arith.cmpi eq, %arg1, %c2_i32 : i32
    %c1_i32 = arith.constant 1 : i32
    %c2_i32_0 = arith.constant 2 : i32
    %1 = arith.select %0, %c1_i32, %c2_i32_0 : i32
    %c0_i32 = arith.constant 0 : i32
    %c0_i32_1 = arith.constant 0 : i32
    %c0_i32_2 = arith.constant 0 : i32
    return %1, %arg0, %c0_i32, %c0_i32_1 : i32, i32, i32, i32
  }
  func.func @transform_3(%arg0: i32, %arg1: i32, %arg2: memref<2x3xi32, #tpu.memory_space<smem>>) -> (i32, i32) {
    %c0_i32 = arith.constant 0 : i32
    %c0_i32_0 = arith.constant 0 : i32
    %c0_i32_1 = arith.constant 0 : i32
    return %c0_i32, %c0_i32_0 : i32, i32
  }
  func.func @transform_4(%arg0: i32, %arg1: i32, %arg2: memref<2x3xi32, #tpu.memory_space<smem>>) -> (i32, i32) {
    %c0_i32 = arith.constant 0 : i32
    %c0_i32_0 = arith.constant 0 : i32
    %c0_i32_1 = arith.constant 0 : i32
    return %c0_i32, %c0_i32_0 : i32, i32
  }
  func.func @transform_5(%arg0: i32, %arg1: i32, %arg2: memref<2x3xi32, #tpu.memory_space<smem>>) -> (i32, i32, i32, i32) {
    %c0_i32 = arith.constant 0 : i32
    %c0_i32_0 = arith.constant 0 : i32
    %c0_i32_1 = arith.constant 0 : i32
    %c0_i32_2 = arith.constant 0 : i32
    return %arg1, %c0_i32, %c0_i32_0, %c0_i32_1 : i32, i32, i32, i32
  }
  func.func @transform_6(%arg0: i32, %arg1: i32, %arg2: memref<2x3xi32, #tpu.memory_space<smem>>) -> (i32, i32, i32, i32) {
    %c0_i32 = arith.constant 0 : i32
    %c0_i32_0 = arith.constant 0 : i32
    %c0_i32_1 = arith.constant 0 : i32
    %c0_i32_2 = arith.constant 0 : i32
    return %arg1, %c0_i32, %c0_i32_0, %c0_i32_1 : i32, i32, i32, i32
  }
  func.func @transform_7(%arg0: i32, %arg1: i32, %arg2: memref<2x3xi32, #tpu.memory_space<smem>>) -> (i32, i32, i32, i32) {
    %c0_i32 = arith.constant 0 : i32
    %c0_i32_0 = arith.constant 0 : i32
    %c0_i32_1 = arith.constant 0 : i32
    %c0_i32_2 = arith.constant 0 : i32
    return %arg1, %c0_i32, %c0_i32_0, %c0_i32_1 : i32, i32, i32, i32
  }
  func.func @transform_8(%arg0: i32, %arg1: i32, %arg2: memref<2x3xi32, #tpu.memory_space<smem>>) -> (i32, i32, i32, i32) {
    %c0_i32 = arith.constant 0 : i32
    %c0_i32_0 = arith.constant 0 : i32
    %c0_i32_1 = arith.constant 0 : i32
    %c0_i32_2 = arith.constant 0 : i32
    return %arg1, %c0_i32, %c0_i32_0, %c0_i32_1 : i32, i32, i32, i32
  }
  func.func @transform_9(%arg0: i32, %arg1: i32, %arg2: memref<2x3xi32, #tpu.memory_space<smem>>) -> (i32, i32, i32, i32) {
    %c0_i32 = arith.constant 0 : i32
    %c0_i32_0 = arith.constant 0 : i32
    %c0_i32_1 = arith.constant 0 : i32
    return %arg1, %arg0, %c0_i32, %c0_i32_0 : i32, i32, i32, i32
  }
}

</mosaic_0001>

<llo_original>
// kernel: tpu_custom_call.1
$region0: #{tpu_custom_call.1}
  #allocation0 [shape = 'u32[]', space=smem, size = 0x4, offset = 0x4, fixed_abs, tag = 'smem constant byte address 0x4 - core index']
  #allocation1 [shape = 'u32[144,128]{1,0:T(1,128)}', space=vmem, size = 0x12000, scoped, tag = 'internal scratch']
  #allocation2 [shape = 's32[1]{0}', space=sflag, size = 0x4, scoped, tag = 'scoped memory for tpu_custom_call.1']
  #allocation3 [shape = 'u8[1024]{0}', space=smem, size = 0x400, scoped, tag = 'prefetched SMEM operand 0']
  %s0 = inlined_call_operand.hbm [shape: s32[2,3], index: 0, kind: input, shape index: {}]
  %s1 = inlined_call_operand.hbm [shape: f32[3,2,8,32], index: 1, kind: input, shape index: {}]
  %s2 = inlined_call_operand.hbm [shape: f32[3,2,8,32], index: 2, kind: input, shape index: {}]
  %s3 = inlined_call_operand.hbm [shape: f32[3,2,8,32], index: 3, kind: input, shape index: {}]
  %s4 = inlined_call_operand.vmem [shape: f32[1,32], index: 4, kind: input, shape index: {}]
  %s5 = inlined_call_operand.vmem [shape: f32[1,32], index: 5, kind: input, shape index: {}]
  %s6 = inlined_call_operand.hbm [shape: f32[3,3,32,64], index: 6, kind: input, shape index: {}]
  %s7 = inlined_call_operand.vmem [shape: f32[3,3,1,64], index: 7, kind: input, shape index: {}]
  %s8 = inlined_call_operand.hbm [shape: f32[3,6,32,32], index: 8, kind: input, shape index: {}]
  %s9 = inlined_call_operand.vmem [shape: f32[3,6,1,32], index: 9, kind: input, shape index: {}]
  %s10 = inlined_call_operand.hbm [shape: f32[3,2,8,32], index: 10, kind: output, shape index: {}]
  %s11 = sld [smem:[#allocation0]]
  $region89: #{tpu_custom_call.1} parent=0
    _
  %s13 = ssub.s32 1, %s11
  %s14 = scalar_select 0, %s13, %s11
  %16 = dma.hbm_to_smem %s0, 32, [#allocation3], [#allocation2]
  %17 = dma.done [#allocation2], 32
  %18 = sfence
  $region1: #{tpu_custom_call.1} parent=0
    #allocation4 [shape = 'u8[8192]{0}', space=vmem, size = 0x2000, scoped, tag = 'input window, operand 1']
    #allocation5 [shape = 's32[2]{0}', space=sflag, size = 0x8, scoped, tag = 'scoped memory for tpu_custom_call.1']
    #allocation6 [shape = 's32[2]{0}', space=sflag, size = 0x8, scoped, tag = 'scoped memory for tpu_custom_call.1']
    #allocation7 [shape = 'u8[8192]{0}', space=vmem, size = 0x2000, scoped, tag = 'input window, operand 2']
    #allocation8 [shape = 's32[2]{0}', space=sflag, size = 0x8, scoped, tag = 'scoped memory for tpu_custom_call.1']
    #allocation9 [shape = 'u8[8192]{0}', space=vmem, size = 0x2000, scoped, tag = 'input window, operand 3']
    #allocation10 [shape = 'u8[98304]{0}', space=vmem, size = 0x18000, scoped, tag = 'input window, operand 6']
    #allocation11 [shape = 's32[2]{0}', space=sflag, size = 0x8, scoped, tag = 'scoped memory for tpu_custom_call.1']
    #allocation12 [shape = 'u8[196608]{0}', space=vmem, size = 0x30000, scoped, tag = 'input window, operand 8']
    #allocation13 [shape = 'u8[8192]{0}', space=vmem, size = 0x2000, scoped, tag = 'output window, operand 0']
    %19 = vsyncpa [#allocation5], 0
    %s20 = scalar_lea.sflag [#allocation5], 1
    %21 = vsyncpa %s20, 0
    %22 = vsyncpa [#allocation8], 0
    %s23 = scalar_lea.sflag [#allocation8], 1
    %24 = vsyncpa %s23, 0
    %25 = vsyncpa [#allocation11], 0
    %s26 = scalar_lea.sflag [#allocation11], 1
    %27 = vsyncpa %s26, 0
    %28 = vsyncpa [#allocation6], 0
    %s29 = scalar_lea.sflag [#allocation6], 1
    %30 = vsyncpa %s29, 0
    loop: start=0, step=1, limit=8
    $region2: #{tpu_custom_call.1} parent=1 // loop_pre_header
      _
    $region3: #{tpu_custom_call.1} parent=1 // loop_header
      %s32 = sphi 0, %s36
      %p33 = scmp.ge.s32.totalorder %s32, 8
      %s39 = sphi 0, %s51
      %s40 = sphi 0, %s47
      %s41 = sphi 0, %s39
      %s42 = sphi 0, %s40
      %s43 = sphi 0, %s41
      %s44 = sphi 0, %s42
      %s56 = sphi 0, %s58
      %s59 = sphi 0, %s56
      %s60 = sphi 0, %s59
      %s76 = sphi 0, %s60
      %s88 = sphi 0, %s90
      %s91 = sphi 0, %s88
      %s92 = sphi 0, %s91
      %s108 = sphi 0, %s92
      %s120 = sphi 0, %s122
      %s123 = sphi 0, %s120
      %s124 = sphi 0, %s123
      %s140 = sphi 0, %s124
      %s144 = sphi 0, %s144
      %s146 = sphi 0, %s144
      %s147 = sphi 0, %s146
      %s161 = sphi 0, %s147
      %s165 = sphi 0, %s165
      %s167 = sphi 0, %s165
      %s168 = sphi 0, %s167
      %s182 = sphi 0, %s168
      %s188 = sphi 0, %s190
      %s191 = sphi 0, %s188
      %s192 = sphi 0, %s191
      %s208 = sphi 0, %s192
      %s214 = sphi 0, %s216
      %s217 = sphi 0, %s214
      %s218 = sphi 0, %s217
      %s234 = sphi 0, %s218
      %s240 = sphi 0, %s242
      %s243 = sphi 0, %s240
      %s244 = sphi 0, %s243
      %s260 = sphi 0, %s244
      %s266 = sphi 0, %s268
      %s269 = sphi 0, %s266
      %s270 = sphi 0, %s269
      %s286 = sphi 0, %s270
      %s294 = sphi 0, %s296
      %s297 = sphi 0, %s294
      %s298 = sphi 0, %s297
      %s314 = sphi 0, %s298
    $region4: #{tpu_custom_call.1} parent=1 // loop_header_branch
      %35 = sbr.rel (%p33) target = $region8
    $region5: #{tpu_custom_call.1} parent=1 // loop_body
      %s37 = ssub.s32 %s32, 1
      %s38 = ssub.s32 %s32, 2
      %s45 = sadd.s32 1, %s40
      %p46 = scmp.ge.s32.totalorder %s45, 3
      %s47 = scalar_select %p46, 0, %s45
      %s48 = sadd.s32 1, %s39
      %s49 = scalar_select %p46, %s48, %s39
      %p50 = scmp.ge.s32.totalorder %s49, 2
      %s51 = scalar_select %p50, 0, %s49
      %s52 = ssub.s32 %s40, %s47
      %s53 = ssub.s32 %s39, %s51
      %s54 = sor.u32 %s52, %s53
      %p55 = scmp.eq.s32.totalorder %s54, 0
      %s57 = sadd.s32 %s56, 1
      %s58 = scalar_select %p55, %s56, %s57
      %p61 = pneg %p55
      %p62 = scmp.eq.s32.totalorder %s32, 5
      %p63 = por %p61, %p62
      %p64 = scmp.ne.s32.totalorder %s56, %s59
      %p65 = scmp.eq.s32.totalorder %s32, 0
      %p66 = por %p64, %p65
      %p67 = scmp.ne.s32.totalorder %s56, %s59
      %p68 = scmp.eq.s32.totalorder %s37, 5
      %p69 = por %p67, %p68
      %p70 = scmp.ne.s32.totalorder %s59, %s60
      %p71 = scmp.eq.s32.totalorder %s37, 0
      %p72 = por %p70, %p71
      %p73 = scmp.ne.s32.totalorder %s59, %s60
      %p74 = scmp.eq.s32.totalorder %s38, 5
      %p75 = por %p73, %p74
      %p77 = scmp.ne.s32.totalorder %s60, %s76
      %p78 = scmp.eq.s32.totalorder %s38, 0
      %p79 = por %p77, %p78
      %p80 = scmp.eq.s32.totalorder %s40, 0
      %s81 = scalar_select %p80, 1, 0
      %p82 = scmp.eq.s32.totalorder %s47, 0
      %s83 = scalar_select %p82, 1, 0
      %s84 = ssub.s32 %s81, %s83
      %s85 = ssub.s32 %s39, %s51
      %s86 = sor.u32 %s84, %s85
      %p87 = scmp.eq.s32.totalorder %s86, 0
      %s89 = sadd.s32 %s88, 1
      %s90 = scalar_select %p87, %s88, %s89
      %p93 = pneg %p87
      %p94 = scmp.eq.s32.totalorder %s32, 5
      %p95 = por %p93, %p94
      %p96 = scmp.ne.s32.totalorder %s88, %s91
      %p97 = scmp.eq.s32.totalorder %s32, 0
      %p98 = por %p96, %p97
      %p99 = scmp.ne.s32.totalorder %s88, %s91
      %p100 = scmp.eq.s32.totalorder %s37, 5
      %p101 = por %p99, %p100
      %p102 = scmp.ne.s32.totalorder %s91, %s92
      %p103 = scmp.eq.s32.totalorder %s37, 0
      %p104 = por %p102, %p103
      %p105 = scmp.ne.s32.totalorder %s91, %s92
      %p106 = scmp.eq.s32.totalorder %s38, 5
      %p107 = por %p105, %p106
      %p109 = scmp.ne.s32.totalorder %s92, %s108
      %p110 = scmp.eq.s32.totalorder %s38, 0
      %p111 = por %p109, %p110
      %p112 = scmp.eq.s32.totalorder %s40, 2
      %s113 = scalar_select %p112, 1, 2
      %p114 = scmp.eq.s32.totalorder %s47, 2
      %s115 = scalar_select %p114, 1, 2
      %s116 = ssub.s32 %s113, %s115
      %s117 = ssub.s32 %s39, %s51
      %s118 = sor.u32 %s116, %s117
      %p119 = scmp.eq.s32.totalorder %s118, 0
      %s121 = sadd.s32 %s120, 1
      %s122 = scalar_select %p119, %s120, %s121
      %p125 = pneg %p119
      %p126 = scmp.eq.s32.totalorder %s32, 5
      %p127 = por %p125, %p126
      %p128 = scmp.ne.s32.totalorder %s120, %s123
      %p129 = scmp.eq.s32.totalorder %s32, 0
      %p130 = por %p128, %p129
      %p131 = scmp.ne.s32.totalorder %s120, %s123
      %p132 = scmp.eq.s32.totalorder %s37, 5
      %p133 = por %p131, %p132
      %p134 = scmp.ne.s32.totalorder %s123, %s124
      %p135 = scmp.eq.s32.totalorder %s37, 0
      %p136 = por %p134, %p135
      %p137 = scmp.ne.s32.totalorder %s123, %s124
      %p138 = scmp.eq.s32.totalorder %s38, 5
      %p139 = por %p137, %p138
      %p141 = scmp.ne.s32.totalorder %s124, %s140
      %p142 = scmp.eq.s32.totalorder %s38, 0
      %p143 = por %p141, %p142
      %s145 = sadd.s32 %s144, 1
      %p148 = scmp.eq.s32.totalorder %s32, 5
      %p149 = scmp.ne.s32.totalorder %s144, %s146
      %p150 = scmp.eq.s32.totalorder %s32, 0
      %p151 = por %p149, %p150
      %p152 = scmp.ne.s32.totalorder %s144, %s146
      %p153 = scmp.eq.s32.totalorder %s37, 5
      %p154 = por %p152, %p153
      %p155 = scmp.ne.s32.totalorder %s146, %s147
      %p156 = scmp.eq.s32.totalorder %s37, 0
      %p157 = por %p155, %p156
      %p158 = scmp.ne.s32.totalorder %s146, %s147
      %p159 = scmp.eq.s32.totalorder %s38, 5
      %p160 = por %p158, %p159
      %p162 = scmp.ne.s32.totalorder %s147, %s161
      %p163 = scmp.eq.s32.totalorder %s38, 0
      %p164 = por %p162, %p163
      %s166 = sadd.s32 %s165, 1
      %p169 = scmp.eq.s32.totalorder %s32, 5
      %p170 = scmp.ne.s32.totalorder %s165, %s167
      %p171 = scmp.eq.s32.totalorder %s32, 0
      %p172 = por %p170, %p171
      %p173 = scmp.ne.s32.totalorder %s165, %s167
      %p174 = scmp.eq.s32.totalorder %s37, 5
      %p175 = por %p173, %p174
      %p176 = scmp.ne.s32.totalorder %s167, %s168
      %p177 = scmp.eq.s32.totalorder %s37, 0
      %p178 = por %p176, %p177
      %p179 = scmp.ne.s32.totalorder %s167, %s168
      %p180 = scmp.eq.s32.totalorder %s38, 5
      %p181 = por %p179, %p180
      %p183 = scmp.ne.s32.totalorder %s168, %s182
      %p184 = scmp.eq.s32.totalorder %s38, 0
      %p185 = por %p183, %p184
      %s186 = ssub.s32 %s40, %s47
      %p187 = scmp.eq.s32.totalorder %s186, 0
      %s189 = sadd.s32 %s188, 1
      %s190 = scalar_select %p187, %s188, %s189
      %p193 = pneg %p187
      %p194 = scmp.eq.s32.totalorder %s32, 5
      %p195 = por %p193, %p194
      %p196 = scmp.ne.s32.totalorder %s188, %s191
      %p197 = scmp.eq.s32.totalorder %s32, 0
      %p198 = por %p196, %p197
      %p199 = scmp.ne.s32.totalorder %s188, %s191
      %p200 = scmp.eq.s32.totalorder %s37, 5
      %p201 = por %p199, %p200
      %p202 = scmp.ne.s32.totalorder %s191, %s192
      %p203 = scmp.eq.s32.totalorder %s37, 0
      %p204 = por %p202, %p203
      %p205 = scmp.ne.s32.totalorder %s191, %s192
      %p206 = scmp.eq.s32.totalorder %s38, 5
      %p207 = por %p205, %p206
      %p209 = scmp.ne.s32.totalorder %s192, %s208
      %p210 = scmp.eq.s32.totalorder %s38, 0
      %p211 = por %p209, %p210
      %s212 = ssub.s32 %s40, %s47
      %p213 = scmp.eq.s32.totalorder %s212, 0
      %s215 = sadd.s32 %s214, 1
      %s216 = scalar_select %p213, %s214, %s215
      %p219 = pneg %p213
      %p220 = scmp.eq.s32.totalorder %s32, 5
      %p221 = por %p219, %p220
      %p222 = scmp.ne.s32.totalorder %s214, %s217
      %p223 = scmp.eq.s32.totalorder %s32, 0
      %p224 = por %p222, %p223
      %p225 = scmp.ne.s32.totalorder %s214, %s217
      %p226 = scmp.eq.s32.totalorder %s37, 5
      %p227 = por %p225, %p226
      %p228 = scmp.ne.s32.totalorder %s217, %s218
      %p229 = scmp.eq.s32.totalorder %s37, 0
      %p230 = por %p228, %p229
      %p231 = scmp.ne.s32.totalorder %s217, %s218
      %p232 = scmp.eq.s32.totalorder %s38, 5
      %p233 = por %p231, %p232
      %p235 = scmp.ne.s32.totalorder %s218, %s234
      %p236 = scmp.eq.s32.totalorder %s38, 0
      %p237 = por %p235, %p236
      %s238 = ssub.s32 %s40, %s47
      %p239 = scmp.eq.s32.totalorder %s238, 0
      %s241 = sadd.s32 %s240, 1
      %s242 = scalar_select %p239, %s240, %s241
      %p245 = pneg %p239
      %p246 = scmp.eq.s32.totalorder %s32, 5
      %p247 = por %p245, %p246
      %p248 = scmp.ne.s32.totalorder %s240, %s243
      %p249 = scmp.eq.s32.totalorder %s32, 0
      %p250 = por %p248, %p249
      %p251 = scmp.ne.s32.totalorder %s240, %s243
      %p252 = scmp.eq.s32.totalorder %s37, 5
      %p253 = por %p251, %p252
      %p254 = scmp.ne.s32.totalorder %s243, %s244
      %p255 = scmp.eq.s32.totalorder %s37, 0
      %p256 = por %p254, %p255
      %p257 = scmp.ne.s32.totalorder %s243, %s244
      %p258 = scmp.eq.s32.totalorder %s38, 5
      %p259 = por %p257, %p258
      %p261 = scmp.ne.s32.totalorder %s244, %s260
      %p262 = scmp.eq.s32.totalorder %s38, 0
      %p263 = por %p261, %p262
      %s264 = ssub.s32 %s40, %s47
      %p265 = scmp.eq.s32.totalorder %s264, 0
      %s267 = sadd.s32 %s266, 1
      %s268 = scalar_select %p265, %s266, %s267
      %p271 = pneg %p265
      %p272 = scmp.eq.s32.totalorder %s32, 5
      %p273 = por %p271, %p272
      %p274 = scmp.ne.s32.totalorder %s266, %s269
      %p275 = scmp.eq.s32.totalorder %s32, 0
      %p276 = por %p274, %p275
      %p277 = scmp.ne.s32.totalorder %s266, %s269
      %p278 = scmp.eq.s32.totalorder %s37, 5
      %p279 = por %p277, %p278
      %p280 = scmp.ne.s32.totalorder %s269, %s270
      %p281 = scmp.eq.s32.totalorder %s37, 0
      %p282 = por %p280, %p281
      %p283 = scmp.ne.s32.totalorder %s269, %s270
      %p284 = scmp.eq.s32.totalorder %s38, 5
      %p285 = por %p283, %p284
      %p287 = scmp.ne.s32.totalorder %s270, %s286
      %p288 = scmp.eq.s32.totalorder %s38, 0
      %p289 = por %p287, %p288
      %s290 = ssub.s32 %s40, %s47
      %s291 = ssub.s32 %s39, %s51
      %s292 = sor.u32 %s290, %s291
      %p293 = scmp.eq.s32.totalorder %s292, 0
      %s295 = sadd.s32 %s294, 1
      %s296 = scalar_select %p293, %s294, %s295
      %p299 = pneg %p293
      %p300 = scmp.eq.s32.totalorder %s32, 5
      %p301 = por %p299, %p300
      %p302 = scmp.ne.s32.totalorder %s294, %s297
      %p303 = scmp.eq.s32.totalorder %s32, 0
      %p304 = por %p302, %p303
      %p305 = scmp.ne.s32.totalorder %s294, %s297
      %p306 = scmp.eq.s32.totalorder %s37, 5
      %p307 = por %p305, %p306
      %p308 = scmp.ne.s32.totalorder %s297, %s298
      %p309 = scmp.eq.s32.totalorder %s37, 0
      %p310 = por %p308, %p309
      %p311 = scmp.ne.s32.totalorder %s297, %s298
      %p312 = scmp.eq.s32.totalorder %s38, 5
      %p313 = por %p311, %p312
      %p315 = scmp.ne.s32.totalorder %s298, %s314
      %p316 = scmp.eq.s32.totalorder %s38, 0
      %p317 = por %p315, %p316
      %p318 = scmp.le.s32.totalorder 1, %s32
      %p319 = scmp.lt.s32.totalorder %s32, 7
      %p320 = pnand %p318, %p319
      %p321 = pneg %p320
      // Predicated region
      $region9: #{tpu_custom_call.1} parent=5 // pred_check
        _
      $region10: #{tpu_custom_call.1} parent=5 // pred_check_branch
        %323 = sbr.rel (%p320) target = $region12
      $region11: #{tpu_custom_call.1} parent=5 // pred_region
        %s324 = ssub.s32 %s32, 1
        // Predicated region
        $region13: #{tpu_custom_call.1} parent=11 // pred_check
          %p325 = pneg %p157
        $region14: #{tpu_custom_call.1} parent=11 // pred_check_branch
          %327 = sbr.rel (%p325) target = $region16
        $region15: #{tpu_custom_call.1} parent=11 // pred_region
          _
        $region16: #{tpu_custom_call.1} parent=11 // pred_fallthru
          _
        // Predicated region
        $region17: #{tpu_custom_call.1} parent=11 // pred_check
          %p328 = pneg %p178
        $region18: #{tpu_custom_call.1} parent=11 // pred_check_branch
          %330 = sbr.rel (%p328) target = $region20
        $region19: #{tpu_custom_call.1} parent=11 // pred_region
          _
        $region20: #{tpu_custom_call.1} parent=11 // pred_fallthru
          _
      $region12: #{tpu_custom_call.1} parent=5 // pred_fallthru
        _
      %p331 = scmp.lt.s32.totalorder %s32, 6
      // Predicated region
      $region21: #{tpu_custom_call.1} parent=5 // pred_check
        %p332 = pneg %p331
      $region22: #{tpu_custom_call.1} parent=5 // pred_check_branch
        %334 = sbr.rel (%p332) target = $region24
      $region23: #{tpu_custom_call.1} parent=5 // pred_region
        // Predicated region
        $region25: #{tpu_custom_call.1} parent=23 // pred_check
          %p335 = pneg %p66
        $region26: #{tpu_custom_call.1} parent=23 // pred_check_branch
          %337 = sbr.rel (%p335) target = $region28
        $region27: #{tpu_custom_call.1} parent=23 // pred_region
          %s338 = sand.u32 %s56, 1
          %s339 = scalar_lea.sflag [#allocation5], %s338
          %s340 = sand.u32 %s56, 1
          %s341 = smul.addr %s340, 8
          %s342 = scalar_lea.vmem [#allocation4], %s341
          %s344 = ssub.s32 128, 128
          %345 = vsyncadd %s339, %s344
          %s346 = smul.addr %s40, 2
          %s347 = sadd.s32 %s39, %s346
          %s348 = smul.addr %s347, 128
          %s349 = scalar_lea.hbm %s1, %s348
          %s351 = sshll.u32 %s342, 4
          %s352 = int_to_ptr.vmem [resolvable:$true] %s351
          %354 = dma.hbm_to_vmem [thread:$0]  %s349, 128, %s352, %s339
        $region28: #{tpu_custom_call.1} parent=23 // pred_fallthru
          _
        // Predicated region
        $region29: #{tpu_custom_call.1} parent=23 // pred_check
          %p355 = pneg %p98
        $region30: #{tpu_custom_call.1} parent=23 // pred_check_branch
          %357 = sbr.rel (%p355) target = $region32
        $region31: #{tpu_custom_call.1} parent=23 // pred_region
          %s358 = sand.u32 %s32, 1
          %s359 = scalar_lea.sflag [#allocation8], %s358
          %s360 = sand.u32 %s88, 1
          %s361 = smul.addr %s360, 8
          %s362 = scalar_lea.vmem [#allocation7], %s361
          %p363 = scmp.eq.s32.totalorder %s40, 0
          %s364 = scalar_select %p363, 1, 0
          %s366 = ssub.s32 128, 128
          %367 = vsyncadd %s359, %s366
          %s368 = smul.addr %s364, 2
          %s369 = sadd.s32 %s39, %s368
          %s370 = smul.addr %s369, 128
          %s371 = scalar_lea.hbm %s2, %s370
          %s373 = sshll.u32 %s362, 4
          %s374 = int_to_ptr.vmem [resolvable:$true] %s373
          %376 = dma.hbm_to_vmem [thread:$0]  %s371, 128, %s374, %s359
        $region32: #{tpu_custom_call.1} parent=23 // pred_fallthru
          _
        // Predicated region
        $region33: #{tpu_custom_call.1} parent=23 // pred_check
          %p377 = pneg %p130
        $region34: #{tpu_custom_call.1} parent=23 // pred_check_branch
          %379 = sbr.rel (%p377) target = $region36
        $region35: #{tpu_custom_call.1} parent=23 // pred_region
          %s380 = sand.u32 %s32, 1
          %s381 = scalar_lea.sflag [#allocation8], %s380
          %s382 = sand.u32 %s120, 1
          %s383 = smul.addr %s382, 8
          %s384 = scalar_lea.vmem [#allocation9], %s383
          %p385 = scmp.eq.s32.totalorder %s40, 2
          %s386 = scalar_select %p385, 1, 2
          %s388 = ssub.s32 128, 128
          %389 = vsyncadd %s381, %s388
          %s390 = smul.addr %s386, 2
          %s391 = sadd.s32 %s39, %s390
          %s392 = smul.addr %s391, 128
          %s393 = scalar_lea.hbm %s3, %s392
          %s395 = sshll.u32 %s384, 4
          %s396 = int_to_ptr.vmem [resolvable:$true] %s395
          %398 = dma.hbm_to_vmem [thread:$0]  %s393, 128, %s396, %s381
        $region36: #{tpu_custom_call.1} parent=23 // pred_fallthru
          _
        // Predicated region
        $region37: #{tpu_custom_call.1} parent=23 // pred_check
          %p399 = pneg %p198
        $region38: #{tpu_custom_call.1} parent=23 // pred_check_branch
          %401 = sbr.rel (%p399) target = $region40
        $region39: #{tpu_custom_call.1} parent=23 // pred_region
          %s402 = sand.u32 %s32, 1
          %s403 = scalar_lea.sflag [#allocation11], %s402
          %s404 = sand.u32 %s188, 1
          %s405 = smul.addr %s404, 96
          %s406 = scalar_lea.vmem [#allocation10], %s405
          %s408 = ssub.s32 1536, 1536
          %409 = vsyncadd %s403, %s408
          %s410 = smul.addr %s40, 12
          %s411 = smul.addr %s410, 128
          %s412 = scalar_lea.hbm %s6, %s411
          %s413 = sshll.u32 %s406, 4
          %s414 = int_to_ptr.vmem [resolvable:$true] %s413
          %419 = dma.hbm_to_vmem [thread:$0]  %s412, 1536, %s414, %s403, 128, 128, 8
        $region40: #{tpu_custom_call.1} parent=23 // pred_fallthru
          _
        // Predicated region
        $region41: #{tpu_custom_call.1} parent=23 // pred_check
          %p420 = pneg %p224
        $region42: #{tpu_custom_call.1} parent=23 // pred_check_branch
          %422 = sbr.rel (%p420) target = $region44
        $region43: #{tpu_custom_call.1} parent=23 // pred_region
          %p423 = scmp.lt.s32.totalorder %s40, 2
          %s424 = scalar_select %p423, %s40, 2
          %s425 = smul.addr %s424, 3
          %s426 = scalar_lea.vmem %s7, %s425
        $region44: #{tpu_custom_call.1} parent=23 // pred_fallthru
          _
        // Predicated region
        $region45: #{tpu_custom_call.1} parent=23 // pred_check
          %p427 = pneg %p250
        $region46: #{tpu_custom_call.1} parent=23 // pred_check_branch
          %429 = sbr.rel (%p427) target = $region48
        $region47: #{tpu_custom_call.1} parent=23 // pred_region
          %s430 = sand.u32 %s32, 1
          %s431 = scalar_lea.sflag [#allocation11], %s430
          %s432 = sand.u32 %s240, 1
          %s433 = smul.addr %s432, 192
          %s434 = scalar_lea.vmem [#allocation12], %s433
          %s436 = ssub.s32 3072, 3072
          %437 = vsyncadd %s431, %s436
          %s438 = smul.addr %s40, 24
          %s439 = smul.addr %s438, 128
          %s440 = scalar_lea.hbm %s8, %s439
          %s441 = sshll.u32 %s434, 4
          %s442 = int_to_ptr.vmem [resolvable:$true] %s441
          %447 = dma.hbm_to_vmem [thread:$0]  %s440, 3072, %s442, %s431, 128, 128, 8
        $region48: #{tpu_custom_call.1} parent=23 // pred_fallthru
          _
        // Predicated region
        $region49: #{tpu_custom_call.1} parent=23 // pred_check
          %p448 = pneg %p276
        $region50: #{tpu_custom_call.1} parent=23 // pred_check_branch
          %450 = sbr.rel (%p448) target = $region52
        $region51: #{tpu_custom_call.1} parent=23 // pred_region
          %p451 = scmp.lt.s32.totalorder %s40, 2
          %s452 = scalar_select %p451, %s40, 2
          %s453 = smul.addr %s452, 6
          %s454 = scalar_lea.vmem %s9, %s453
        $region52: #{tpu_custom_call.1} parent=23 // pred_fallthru
          _
      $region24: #{tpu_custom_call.1} parent=5 // pred_fallthru
        _
      %p455 = scmp.le.s32.totalorder 1, %s32
      %p456 = scmp.lt.s32.totalorder %s32, 7
      %p457 = pnand %p455, %p456
      %p458 = pneg %p457
      // Predicated region
      $region53: #{tpu_custom_call.1} parent=5 // pred_check
        _
      $region54: #{tpu_custom_call.1} parent=5 // pred_check_branch
        %460 = sbr.rel (%p457) target = $region56
      $region55: #{tpu_custom_call.1} parent=5 // pred_region
        %s461 = ssub.s32 %s32, 1
        %s462 = sand.u32 %s59, 1
        %s463 = scalar_lea.sflag [#allocation5], %s462
        %s464 = sand.u32 %s59, 1
        %s465 = smul.addr %s464, 8
        %s466 = scalar_lea.vmem [#allocation4], %s465
        // Predicated region
        $region57: #{tpu_custom_call.1} parent=55 // pred_check
          %p467 = pneg %p72
        $region58: #{tpu_custom_call.1} parent=55 // pred_check_branch
          %469 = sbr.rel (%p467) target = $region60
        $region59: #{tpu_custom_call.1} parent=55 // pred_region
          %470 = dma.done %s463, 128
        $region60: #{tpu_custom_call.1} parent=55 // pred_fallthru
          _
        %s471 = sand.u32 %s37, 1
        %s472 = scalar_lea.sflag [#allocation8], %s471
        %s473 = sand.u32 %s91, 1
        %s474 = smul.addr %s473, 8
        %s475 = scalar_lea.vmem [#allocation7], %s474
        // Predicated region
        $region61: #{tpu_custom_call.1} parent=55 // pred_check
          %p476 = pneg %p104
        $region62: #{tpu_custom_call.1} parent=55 // pred_check_branch
          %478 = sbr.rel (%p476) target = $region64
        $region63: #{tpu_custom_call.1} parent=55 // pred_region
          %479 = dma.done %s472, 128
        $region64: #{tpu_custom_call.1} parent=55 // pred_fallthru
          _
        %s480 = sand.u32 %s37, 1
        %s481 = scalar_lea.sflag [#allocation8], %s480
        %s482 = sand.u32 %s123, 1
        %s483 = smul.addr %s482, 8
        %s484 = scalar_lea.vmem [#allocation9], %s483
        // Predicated region
        $region65: #{tpu_custom_call.1} parent=55 // pred_check
          %p485 = pneg %p136
        $region66: #{tpu_custom_call.1} parent=55 // pred_check_branch
          %487 = sbr.rel (%p485) target = $region68
        $region67: #{tpu_custom_call.1} parent=55 // pred_region
          %488 = dma.done %s481, 128
        $region68: #{tpu_custom_call.1} parent=55 // pred_fallthru
          _
        %s489 = sand.u32 %s37, 1
        %s490 = scalar_lea.sflag [#allocation11], %s489
        %s491 = sand.u32 %s191, 1
        %s492 = smul.addr %s491, 96
        %s493 = scalar_lea.vmem [#allocation10], %s492
        // Predicated region
        $region69: #{tpu_custom_call.1} parent=55 // pred_check
          %p494 = pneg %p204
        $region70: #{tpu_custom_call.1} parent=55 // pred_check_branch
          %496 = sbr.rel (%p494) target = $region72
        $region71: #{tpu_custom_call.1} parent=55 // pred_region
          %497 = dma.done %s490, 1536
        $region72: #{tpu_custom_call.1} parent=55 // pred_fallthru
          _
        %s498 = sand.u32 %s37, 1
        %s499 = scalar_lea.sflag [#allocation11], %s498
        %s500 = sand.u32 %s243, 1
        %s501 = smul.addr %s500, 192
        %s502 = scalar_lea.vmem [#allocation12], %s501
        // Predicated region
        $region73: #{tpu_custom_call.1} parent=55 // pred_check
          %p503 = pneg %p256
        $region74: #{tpu_custom_call.1} parent=55 // pred_check_branch
          %505 = sbr.rel (%p503) target = $region76
        $region75: #{tpu_custom_call.1} parent=55 // pred_region
          %506 = dma.done %s499, 3072
        $region76: #{tpu_custom_call.1} parent=55 // pred_fallthru
          _
        %s507 = sand.u32 %s59, 1
        %s508 = scalar_lea.sflag [#allocation5], %s507
        %s509 = sand.u32 %s59, 1
        %s510 = smul.addr %s509, 8
        %s511 = scalar_lea.vmem [#allocation4], %s510
        %p512 = pneg %p72
        %p513 = pneg %p69
        %s514 = sand.u32 %s37, 1
        %s515 = scalar_lea.sflag [#allocation8], %s514
        %s516 = sand.u32 %s91, 1
        %s517 = smul.addr %s516, 8
        %s518 = scalar_lea.vmem [#allocation7], %s517
        %p519 = pneg %p104
        %p520 = pneg %p101
        %s521 = sand.u32 %s37, 1
        %s522 = scalar_lea.sflag [#allocation8], %s521
        %s523 = sand.u32 %s123, 1
        %s524 = smul.addr %s523, 8
        %s525 = scalar_lea.vmem [#allocation9], %s524
        %p526 = pneg %p136
        %p527 = pneg %p133
        %p528 = pneg %p157
        %p529 = pneg %p154
        %p530 = pneg %p178
        %p531 = pneg %p175
        %s532 = sand.u32 %s37, 1
        %s533 = scalar_lea.sflag [#allocation11], %s532
        %s534 = sand.u32 %s191, 1
        %s535 = smul.addr %s534, 96
        %s536 = scalar_lea.vmem [#allocation10], %s535
        %p537 = pneg %p204
        %p538 = pneg %p201
        %p539 = scmp.lt.s32.totalorder %s42, 2
        %s540 = scalar_select %p539, %s42, 2
        %s541 = smul.addr %s540, 3
        %s542 = scalar_lea.vmem %s7, %s541
        %p543 = pneg %p230
        %p544 = pneg %p227
        %s545 = sand.u32 %s37, 1
        %s546 = scalar_lea.sflag [#allocation11], %s545
        %s547 = sand.u32 %s243, 1
        %s548 = smul.addr %s547, 192
        %s549 = scalar_lea.vmem [#allocation12], %s548
        %p550 = pneg %p256
        %p551 = pneg %p253
        %p552 = scmp.lt.s32.totalorder %s42, 2
        %s553 = scalar_select %p552, %s42, 2
        %s554 = smul.addr %s553, 6
        %s555 = scalar_lea.vmem %s9, %s554
        %p556 = pneg %p282
        %p557 = pneg %p279
        %p558 = pneg %p310
        %p559 = pneg %p307
        %s560 = sand.u32 %s297, 1
        %s561 = scalar_lea.sflag [#allocation6], %s560
        %s562 = sand.u32 %s297, 1
        %s563 = smul.addr %s562, 8
        %s564 = scalar_lea.vmem [#allocation13], %s563
        %p565 = scmp.eq.s32.totalorder %s42, 0
        %s566 = scalar_select %p565, 1, 0
        %p567 = scmp.eq.s32.totalorder %s42, 2
        %s568 = scalar_select %p567, 1, 2
        %p569 = scmp.lt.s32.totalorder %s42, 2
        %s570 = scalar_select %p569, %s42, 2
        %s571 = smul.addr %s570, 3
        %s572 = scalar_lea.vmem %s7, %s571
        %p573 = scmp.lt.s32.totalorder %s42, 2
        %s574 = scalar_select %p573, %s42, 2
        %s575 = smul.addr %s574, 6
        %s576 = scalar_lea.vmem %s9, %s575
        %v578 = vld [vmem:[%s4] sm:$0x1]
        %v579 = vld [vmem:[%s5] sm:$0x1]
        %v580 = vld [vmem:[%s466] sm:$0xff]
        %vm581 = vcmask 261120
        %v582 = vsel %vm581, %v580, 0.0
        %583 = vadd.xlane.f32.xlu0 %v582
        %v584 = vpop.xlane.xlu0 %583
        %v585 = vrcp.pop 32.0
        %v586 = vmul.f32 %v584, %v585
        %v587 = vsub.f32 %v580, %v586
        %v588 = vmul.f32 %v587, %v587
        %v589 = vsel %vm581, %v588, 0.0
        %590 = vadd.xlane.f32.xlu0 %v589
        %v591 = vpop.xlane.xlu0 %590
        %v592 = vmul.f32 %v591, %v585
        %v593 = vadd.f32 %v592, 1e-05
        %v594 = vrsqrt.pop %v593
        %v595 = vmul.f32 %v587, %v594
        %v597 = vlaneseq
        %v598 = vshrl.u32 %v597, 7
        %v599 = vsub.s32 0, %v598
        %v600 = vrot.slane %v578, %v599
        %v602 = vmul.f32 %v595, %v600
        %v604 = vlaneseq
        %v605 = vshrl.u32 %v604, 7
        %v606 = vsub.s32 0, %v605
        %v607 = vrot.slane %v579, %v606
        %v609 = vadd.f32 %v602, %v607
        %v610 = vld [vmem:[%s475] sm:$0xff]
        %v611 = vsel %vm581, %v610, 0.0
        %612 = vadd.xlane.f32.xlu0 %v611
        %v613 = vpop.xlane.xlu0 %612
        %v614 = vmul.f32 %v613, %v585
        %v615 = vsub.f32 %v610, %v614
        %v616 = vmul.f32 %v615, %v615
        %v617 = vsel %vm581, %v616, 0.0
        %618 = vadd.xlane.f32.xlu0 %v617
        %v619 = vpop.xlane.xlu0 %618
        %v620 = vmul.f32 %v619, %v585
        %v621 = vadd.f32 %v620, 1e-05
        %v622 = vrsqrt.pop %v621
        %v623 = vmul.f32 %v615, %v622
        %v624 = vmul.f32 %v623, %v600
        %v625 = vadd.f32 %v624, %v607
        %v626 = vld [vmem:[%s484] sm:$0xff]
        %v627 = vsel %vm581, %v626, 0.0
        %628 = vadd.xlane.f32.xlu0 %v627
        %v629 = vpop.xlane.xlu0 %628
        %v630 = vmul.f32 %v629, %v585
        %v631 = vsub.f32 %v626, %v630
        %v632 = vmul.f32 %v631, %v631
        %v633 = vsel %vm581, %v632, 0.0
        %634 = vadd.xlane.f32.xlu0 %v633
        %v635 = vpop.xlane.xlu0 %634
        %v636 = vmul.f32 %v635, %v585
        %v637 = vadd.f32 %v636, 1e-05
        %v638 = vrsqrt.pop %v637
        %v639 = vmul.f32 %v631, %v638
        %v640 = vmul.f32 %v639, %v600
        %v641 = vadd.f32 %v640, %v607
        %p642 = scmp.eq.s32.totalorder %s42, 0
        %s643 = scalar_select %p642, 1, 0
        %p644 = scmp.eq.s32.totalorder %s42, 2
        %s645 = scalar_select %p644, 1, 2
        %s646 = sshra.s32 %s42, 7
        %s647 = sand.u32 %s42, 127
        %s648 = sadd.s32 %s646, %s41
        %s649 = smul.u32 %s648, 128
        %s650 = sshra.s32 %s42, 7
        %s651 = sand.u32 %s42, 127
        %s652 = sadd.s32 %s649, %s651
        %s653 = sld [smem:[#allocation3 + %s652]]
        %s654 = scvt.s32.f32 %s653
        %s655 = sshra.s32 %s643, 7
        %s656 = sand.u32 %s643, 127
        %s657 = sadd.s32 %s655, %s41
        %s658 = smul.u32 %s657, 128
        %s659 = sshra.s32 %s643, 7
        %s660 = sand.u32 %s643, 127
        %s661 = sadd.s32 %s658, %s660
        %s662 = sld [smem:[#allocation3 + %s661]]
        %s663 = scvt.s32.f32 %s662
        %s664 = sshra.s32 %s645, 7
        %s665 = sand.u32 %s645, 127
        %s666 = sadd.s32 %s664, %s41
        %s667 = smul.u32 %s666, 128
        %s668 = sshra.s32 %s645, 7
        %s669 = sand.u32 %s645, 127
        %s670 = sadd.s32 %s667, %s669
        %s671 = sld [smem:[#allocation3 + %s670]]
        %s672 = scvt.s32.f32 %s671
        %v673 = vstv %s654
        %v674 = vrcp.pop %v673
        %s675 = vtos %v674
        %v676 = vsel %vm581, %v625, 0.0
        %v677 = vrot.slane %v676, 4
        %v678 = vadd.f32 %v676, %v677
        %v679 = vrot.slane %v678, 2
        %v680 = vadd.f32 %v678, %v679
        %v681 = vrot.slane %v680, 1
        %v682 = vadd.f32 %v680, %v681
        %v683 = vstv %s663
        %v684 = vrcp.pop %v683
        %v685 = vmul.f32 %v682, %v684
        %v686 = vsel %vm581, %v641, 0.0
        %v687 = vrot.slane %v686, 4
        %v688 = vadd.f32 %v686, %v687
        %v689 = vrot.slane %v688, 2
        %v690 = vadd.f32 %v688, %v689
        %v691 = vrot.slane %v690, 1
        %v692 = vadd.f32 %v690, %v691
        %v693 = vstv %s672
        %v694 = vrcp.pop %v693
        %v695 = vmul.f32 %v692, %v694
        %v696 = vsel %vm581, %v609, 0.0
        %v697 = vrot.slane %v696, 4
        %v698 = vadd.f32 %v696, %v697
        %v699 = vrot.slane %v698, 2
        %v700 = vadd.f32 %v698, %v699
        %v701 = vrot.slane %v700, 1
        %v702 = vadd.f32 %v700, %v701
        %v703 = vstv %s675
        %v704 = vmul.f32 %v702, %v703
        %v705 = vld [vmem:[%s493] sm:$0xff]
        %v706 = vld [vmem:[%s493 + $0x8] sm:$0xff]
        %v707 = vld [vmem:[%s493 + $0x10] sm:$0xff]
        %v708 = vld [vmem:[%s493 + $0x18] sm:$0xff]
        %v709 = vld [vmem:[%s572] sm:$0x1]
        %v711 = vsel %vm581, %v685, 0
        %713 = vmatprep.subr.mxu0 0.0
        %714 = vmatpush1.msra.mxu0 %v705
        %715 = vmatprep.subr.mxu0 0.0
        %716 = vmatpush1.msra.mxu0 %v706
        %717 = vmatprep.subr.mxu0 0.0
        %718 = vmatpush1.msra.mxu0 %v707
        %719 = vmatprep.subr.mxu0 0.0
        %720 = vmatpush1.msra.mxu0 %v708
        %721 = vmatprep.subr.mxu0 0.0
        %722 = vmatpush1.msra.mxu0 0.0
        %723 = vmatprep.subr.mxu0 0.0
        %724 = vmatpush1.msra.mxu0 0.0
        %725 = vmatprep.subr.mxu0 0.0
        %726 = vmatpush1.msra.mxu0 0.0
        %727 = vmatprep.subr.mxu0 0.0
        %728 = vmatpush1.msra.mxu0 0.0
        %729 = vmatprep.subr.mxu0 0.0
        %730 = vmatpush1.msra.mxu0 0.0
        %731 = vmatprep.subr.mxu0 0.0
        %732 = vmatpush1.msra.mxu0 0.0
        %733 = vmatprep.subr.mxu0 0.0
        %734 = vmatpush1.msra.mxu0 0.0
        %735 = vmatprep.subr.mxu0 0.0
        %736 = vmatpush1.msra.mxu0 0.0
        %737 = vmatprep.subr.mxu0 0.0
        %738 = vmatpush1.msra.mxu0 0.0
        %739 = vmatprep.subr.mxu0 0.0
        %740 = vmatpush1.msra.mxu0 0.0
        %741 = vmatprep.subr.mxu0 0.0
        %742 = vmatpush1.msra.mxu0 0.0
        %743 = vmatprep.subr.mxu0 0.0
        %744 = vmatpush1.msra.mxu0 0.0
        %745 = vmatprep.subr.mxu0 0.0
        %746 = vmatpush1.msra.mxu0 0.0
        %747 = vmatprep.subr.mxu0 0.0
        %748 = vmatpush1.msra.mxu0 0.0
        %749 = vmatprep.subr.mxu0 0.0
        %750 = vmatpush1.msra.mxu0 0.0
        %751 = vmatprep.subr.mxu0 0.0
        %752 = vmatpush1.msra.mxu0 0.0
        %753 = vmatprep.subr.mxu0 0.0
        %754 = vmatpush1.msra.mxu0 0.0
        %755 = vmatprep.subr.mxu0 0.0
        %756 = vmatpush1.msra.mxu0 0.0
        %757 = vmatprep.subr.mxu0 0.0
        %758 = vmatpush1.msra.mxu0 0.0
        %759 = vmatprep.subr.mxu0 0.0
        %760 = vmatpush1.msra.mxu0 0.0
        %761 = vmatprep.subr.mxu0 0.0
        %762 = vmatpush1.msra.mxu0 0.0
        %763 = vmatprep.subr.mxu0 0.0
        %764 = vmatpush1.msra.mxu0 0.0
        %765 = vmatprep.subr.mxu0 0.0
        %766 = vmatpush1.msra.mxu0 0.0
        %767 = vmatprep.subr.mxu0 0.0
        %768 = vmatpush1.msra.mxu0 0.0
        %769 = vmatprep.subr.mxu0 0.0
        %770 = vmatpush1.msra.mxu0 0.0
        %771 = vmatprep.subr.mxu0 0.0
        %772 = vmatpush1.msra.mxu0 0.0
        %773 = vmatprep.subr.mxu0 0.0
        %774 = vmatpush1.msra.mxu0 0.0
        %775 = vmatprep.subr.mxu0 0.0
        %776 = vmatpush1.msra.mxu0 0.0
        %777 = vmatprep.mubr.f32.mxu0 0.0
        %778 = vmatmul.mubr.f32.gmra.mrb[0].mxu0 %v711
        %v779 = vpop.f32.mrb[0].mxu0
        %v780 = vadd.f32 %v709, %v779
        %v781 = vpop.f32.mrb[0].mxu0
        %782 = vdwg.mxu0
        %v783 = vmul.f32 %v780, 0.5
        %v784 = vmul.f32 %v780, 0.70710677
        %vm785 = vcmp.ge.f32.partialorder %v784, 0.0
        %v786 = vsel %vm785, 1.0, -1.0
        %v787 = vand.u32 2147483647, %v784
        %v788 = vmul.f32 %v787, 0.3275911
        %v789 = vadd.f32 %v788, 1.0
        %v790 = vrcp.pop %v789
        %v791 = vmul.f32 1.0, %v790
        %v792 = vmul.f32 %v791, 1.0614054
        %v793 = vadd.f32 %v792, -1.4531521
        %v794 = vmul.f32 %v793, %v791
        %v795 = vadd.f32 %v794, 1.4214138
        %v796 = vmul.f32 %v795, %v791
        %v797 = vadd.f32 %v796, -0.28449672
        %v798 = vmul.f32 %v797, %v791
        %v799 = vadd.f32 %v798, 0.2548296
        %v800 = vmul.f32 %v799, %v791
        %v801 = vsub.f32 0.0, %v787
        %v802 = vmul.f32 %v801, %v787
        %v803 = vmul.f32 %v802, 1.442695
        %v804 = vpow.pop %v803
        %v805 = vmul.f32 %v800, %v804
        %v806 = vsub.f32 1.0, %v805
        %v807 = vmul.f32 %v786, %v806
        %v808 = vadd.f32 %v807, 1.0
        %v809 = vmul.f32 %v783, %v808
        %v810 = vld [vmem:[%s502] sm:$0xff]
        %v811 = vld [vmem:[%s502 + $0x8] sm:$0xff]
        %v812 = vld [vmem:[%s502 + $0x10] sm:$0xff]
        %v813 = vld [vmem:[%s502 + $0x18] sm:$0xff]
        %v814 = vld [vmem:[%s576] sm:$0x1]
        %v816 = vsel %vm581, %v809, 0
        %818 = vmatprep.subr.mxu0 0.0
        %819 = vmatpush1.msra.mxu0 %v810
        %820 = vmatprep.subr.mxu0 0.0
        %821 = vmatpush1.msra.mxu0 %v811
        %822 = vmatprep.subr.mxu0 0.0
        %823 = vmatpush1.msra.mxu0 %v812
        %824 = vmatprep.subr.mxu0 0.0
        %825 = vmatpush1.msra.mxu0 %v813
        %826 = vmatprep.subr.mxu0 0.0
        %827 = vmatpush1.msra.mxu0 0.0
        %828 = vmatprep.subr.mxu0 0.0
        %829 = vmatpush1.msra.mxu0 0.0
        %830 = vmatprep.subr.mxu0 0.0
        %831 = vmatpush1.msra.mxu0 0.0
        %832 = vmatprep.subr.mxu0 0.0
        %833 = vmatpush1.msra.mxu0 0.0
        %834 = vmatprep.subr.mxu0 0.0
        %835 = vmatpush1.msra.mxu0 0.0
        %836 = vmatprep.subr.mxu0 0.0
        %837 = vmatpush1.msra.mxu0 0.0
        %838 = vmatprep.subr.mxu0 0.0
        %839 = vmatpush1.msra.mxu0 0.0
        %840 = vmatprep.subr.mxu0 0.0
        %841 = vmatpush1.msra.mxu0 0.0
        %842 = vmatprep.subr.mxu0 0.0
        %843 = vmatpush1.msra.mxu0 0.0
        %844 = vmatprep.subr.mxu0 0.0
        %845 = vmatpush1.msra.mxu0 0.0
        %846 = vmatprep.subr.mxu0 0.0
        %847 = vmatpush1.msra.mxu0 0.0
        %848 = vmatprep.subr.mxu0 0.0
        %849 = vmatpush1.msra.mxu0 0.0
        %850 = vmatprep.subr.mxu0 0.0
        %851 = vmatpush1.msra.mxu0 0.0
        %852 = vmatprep.subr.mxu0 0.0
        %853 = vmatpush1.msra.mxu0 0.0
        %854 = vmatprep.subr.mxu0 0.0
        %855 = vmatpush1.msra.mxu0 0.0
        %856 = vmatprep.subr.mxu0 0.0
        %857 = vmatpush1.msra.mxu0 0.0
        %858 = vmatprep.subr.mxu0 0.0
        %859 = vmatpush1.msra.mxu0 0.0
        %860 = vmatprep.subr.mxu0 0.0
        %861 = vmatpush1.msra.mxu0 0.0
        %862 = vmatprep.subr.mxu0 0.0
        %863 = vmatpush1.msra.mxu0 0.0
        %864 = vmatprep.subr.mxu0 0.0
        %865 = vmatpush1.msra.mxu0 0.0
        %866 = vmatprep.subr.mxu0 0.0
        %867 = vmatpush1.msra.mxu0 0.0
        %868 = vmatprep.subr.mxu0 0.0
        %869 = vmatpush1.msra.mxu0 0.0
        %870 = vmatprep.subr.mxu0 0.0
        %871 = vmatpush1.msra.mxu0 0.0
        %872 = vmatprep.subr.mxu0 0.0
        %873 = vmatpush1.msra.mxu0 0.0
        %874 = vmatprep.subr.mxu0 0.0
        %875 = vmatpush1.msra.mxu0 0.0
        %876 = vmatprep.subr.mxu0 0.0
        %877 = vmatpush1.msra.mxu0 0.0
        %878 = vmatprep.subr.mxu0 0.0
        %879 = vmatpush1.msra.mxu0 0.0
        %880 = vmatprep.subr.mxu0 0.0
        %881 = vmatpush1.msra.mxu0 0.0
        %882 = vmatprep.mubr.f32.mxu0 0.0
        %883 = vmatmul.mubr.f32.gmra.mrb[0].mxu0 %v816
        %v884 = vpop.f32.mrb[0].mxu0
        %v885 = vadd.f32 %v814, %v884
        %v886 = vpop.f32.mrb[0].mxu0
        %887 = vdwg.mxu0
        %s888 = scalar_lea.vmem %s502, 32 [#allocation12]
        %v889 = vld [vmem:[%s888] sm:$0xff]
        %v890 = vld [vmem:[%s888 + $0x8] sm:$0xff]
        %v891 = vld [vmem:[%s888 + $0x10] sm:$0xff]
        %v892 = vld [vmem:[%s888 + $0x18] sm:$0xff]
        %s893 = scalar_lea.vmem %s576, 1
        %v894 = vld [vmem:[%s893] sm:$0x1]
        %895 = vrot.lane.b32.xlu0 %v809, 96
        %v896 = vpop.permute.xlu0 %895
        %v897 = vsel %vm581, %v896, 0
        %899 = vmatprep.subr.mxu0 0.0
        %900 = vmatpush1.msra.mxu0 %v889
        %901 = vmatprep.subr.mxu0 0.0
        %902 = vmatpush1.msra.mxu0 %v890
        %903 = vmatprep.subr.mxu0 0.0
        %904 = vmatpush1.msra.mxu0 %v891
        %905 = vmatprep.subr.mxu0 0.0
        %906 = vmatpush1.msra.mxu0 %v892
        %907 = vmatprep.subr.mxu0 0.0
        %908 = vmatpush1.msra.mxu0 0.0
        %909 = vmatprep.subr.mxu0 0.0
        %910 = vmatpush1.msra.mxu0 0.0
        %911 = vmatprep.subr.mxu0 0.0
        %912 = vmatpush1.msra.mxu0 0.0
        %913 = vmatprep.subr.mxu0 0.0
        %914 = vmatpush1.msra.mxu0 0.0
        %915 = vmatprep.subr.mxu0 0.0
        %916 = vmatpush1.msra.mxu0 0.0
        %917 = vmatprep.subr.mxu0 0.0
        %918 = vmatpush1.msra.mxu0 0.0
        %919 = vmatprep.subr.mxu0 0.0
        %920 = vmatpush1.msra.mxu0 0.0
        %921 = vmatprep.subr.mxu0 0.0
        %922 = vmatpush1.msra.mxu0 0.0
        %923 = vmatprep.subr.mxu0 0.0
        %924 = vmatpush1.msra.mxu0 0.0
        %925 = vmatprep.subr.mxu0 0.0
        %926 = vmatpush1.msra.mxu0 0.0
        %927 = vmatprep.subr.mxu0 0.0
        %928 = vmatpush1.msra.mxu0 0.0
        %929 = vmatprep.subr.mxu0 0.0
        %930 = vmatpush1.msra.mxu0 0.0
        %931 = vmatprep.subr.mxu0 0.0
        %932 = vmatpush1.msra.mxu0 0.0
        %933 = vmatprep.subr.mxu0 0.0
        %934 = vmatpush1.msra.mxu0 0.0
        %935 = vmatprep.subr.mxu0 0.0
        %936 = vmatpush1.msra.mxu0 0.0
        %937 = vmatprep.subr.mxu0 0.0
        %938 = vmatpush1.msra.mxu0 0.0
        %939 = vmatprep.subr.mxu0 0.0
        %940 = vmatpush1.msra.mxu0 0.0
        %941 = vmatprep.subr.mxu0 0.0
        %942 = vmatpush1.msra.mxu0 0.0
        %943 = vmatprep.subr.mxu0 0.0
        %944 = vmatpush1.msra.mxu0 0.0
        %945 = vmatprep.subr.mxu0 0.0
        %946 = vmatpush1.msra.mxu0 0.0
        %947 = vmatprep.subr.mxu0 0.0
        %948 = vmatpush1.msra.mxu0 0.0
        %949 = vmatprep.subr.mxu0 0.0
        %950 = vmatpush1.msra.mxu0 0.0
        %951 = vmatprep.subr.mxu0 0.0
        %952 = vmatpush1.msra.mxu0 0.0
        %953 = vmatprep.subr.mxu0 0.0
        %954 = vmatpush1.msra.mxu0 0.0
        %955 = vmatprep.subr.mxu0 0.0
        %956 = vmatpush1.msra.mxu0 0.0
        %957 = vmatprep.subr.mxu0 0.0
        %958 = vmatpush1.msra.mxu0 0.0
        %959 = vmatprep.subr.mxu0 0.0
        %960 = vmatpush1.msra.mxu0 0.0
        %961 = vmatprep.subr.mxu0 0.0
        %962 = vmatpush1.msra.mxu0 0.0
        %963 = vmatprep.mubr.f32.mxu0 0.0
        %964 = vmatmul.mubr.f32.gmra.mrb[0].mxu0 %v897
        %v965 = vpop.f32.mrb[0].mxu0
        %v966 = vadd.f32 %v894, %v965
        %v967 = vpop.f32.mrb[0].mxu0
        %968 = vdwg.mxu0
        %s969 = scalar_lea.vmem %s493, 32 [#allocation10]
        %v970 = vld [vmem:[%s969] sm:$0xff]
        %v971 = vld [vmem:[%s969 + $0x8] sm:$0xff]
        %v972 = vld [vmem:[%s969 + $0x10] sm:$0xff]
        %v973 = vld [vmem:[%s969 + $0x18] sm:$0xff]
        %s974 = scalar_lea.vmem %s572, 1
        %v975 = vld [vmem:[%s974] sm:$0x1]
        %v977 = vsel %vm581, %v695, 0
        %979 = vmatprep.subr.mxu0 0.0
        %980 = vmatpush1.msra.mxu0 %v970
        %981 = vmatprep.subr.mxu0 0.0
        %982 = vmatpush1.msra.mxu0 %v971
        %983 = vmatprep.subr.mxu0 0.0
        %984 = vmatpush1.msra.mxu0 %v972
        %985 = vmatprep.subr.mxu0 0.0
        %986 = vmatpush1.msra.mxu0 %v973
        %987 = vmatprep.subr.mxu0 0.0
        %988 = vmatpush1.msra.mxu0 0.0
        %989 = vmatprep.subr.mxu0 0.0
        %990 = vmatpush1.msra.mxu0 0.0
        %991 = vmatprep.subr.mxu0 0.0
        %992 = vmatpush1.msra.mxu0 0.0
        %993 = vmatprep.subr.mxu0 0.0
        %994 = vmatpush1.msra.mxu0 0.0
        %995 = vmatprep.subr.mxu0 0.0
        %996 = vmatpush1.msra.mxu0 0.0
        %997 = vmatprep.subr.mxu0 0.0
        %998 = vmatpush1.msra.mxu0 0.0
        %999 = vmatprep.subr.mxu0 0.0
        %1000 = vmatpush1.msra.mxu0 0.0
        %1001 = vmatprep.subr.mxu0 0.0
        %1002 = vmatpush1.msra.mxu0 0.0
        %1003 = vmatprep.subr.mxu0 0.0
        %1004 = vmatpush1.msra.mxu0 0.0
        %1005 = vmatprep.subr.mxu0 0.0
        %1006 = vmatpush1.msra.mxu0 0.0
        %1007 = vmatprep.subr.mxu0 0.0
        %1008 = vmatpush1.msra.mxu0 0.0
        %1009 = vmatprep.subr.mxu0 0.0
        %1010 = vmatpush1.msra.mxu0 0.0
        %1011 = vmatprep.subr.mxu0 0.0
        %1012 = vmatpush1.msra.mxu0 0.0
        %1013 = vmatprep.subr.mxu0 0.0
        %1014 = vmatpush1.msra.mxu0 0.0
        %1015 = vmatprep.subr.mxu0 0.0
        %1016 = vmatpush1.msra.mxu0 0.0
        %1017 = vmatprep.subr.mxu0 0.0
        %1018 = vmatpush1.msra.mxu0 0.0
        %1019 = vmatprep.subr.mxu0 0.0
        %1020 = vmatpush1.msra.mxu0 0.0
        %1021 = vmatprep.subr.mxu0 0.0
        %1022 = vmatpush1.msra.mxu0 0.0
        %1023 = vmatprep.subr.mxu0 0.0
        %1024 = vmatpush1.msra.mxu0 0.0
        %1025 = vmatprep.subr.mxu0 0.0
        %1026 = vmatpush1.msra.mxu0 0.0
        %1027 = vmatprep.subr.mxu0 0.0
        %1028 = vmatpush1.msra.mxu0 0.0
        %1029 = vmatprep.subr.mxu0 0.0
        %1030 = vmatpush1.msra.mxu0 0.0
        %1031 = vmatprep.subr.mxu0 0.0
        %1032 = vmatpush1.msra.mxu0 0.0
        %1033 = vmatprep.subr.mxu0 0.0
        %1034 = vmatpush1.msra.mxu0 0.0
        %1035 = vmatprep.subr.mxu0 0.0
        %1036 = vmatpush1.msra.mxu0 0.0
        %1037 = vmatprep.subr.mxu0 0.0
        %1038 = vmatpush1.msra.mxu0 0.0
        %1039 = vmatprep.subr.mxu0 0.0
        %1040 = vmatpush1.msra.mxu0 0.0
        %1041 = vmatprep.subr.mxu0 0.0
        %1042 = vmatpush1.msra.mxu0 0.0
        %1043 = vmatprep.mubr.f32.mxu0 0.0
        %1044 = vmatmul.mubr.f32.gmra.mrb[0].mxu0 %v977
        %v1045 = vpop.f32.mrb[0].mxu0
        %v1046 = vadd.f32 %v975, %v1045
        %v1047 = vpop.f32.mrb[0].mxu0
        %1048 = vdwg.mxu0
        %v1049 = vmul.f32 %v1046, 0.5
        %v1050 = vmul.f32 %v1046, 0.70710677
        %vm1051 = vcmp.ge.f32.partialorder %v1050, 0.0
        %v1052 = vsel %vm1051, 1.0, -1.0
        %v1053 = vand.u32 2147483647, %v1050
        %v1054 = vmul.f32 %v1053, 0.3275911
        %v1055 = vadd.f32 %v1054, 1.0
        %v1056 = vrcp.pop %v1055
        %v1057 = vmul.f32 1.0, %v1056
        %v1058 = vmul.f32 %v1057, 1.0614054
        %v1059 = vadd.f32 %v1058, -1.4531521
        %v1060 = vmul.f32 %v1059, %v1057
        %v1061 = vadd.f32 %v1060, 1.4214138
        %v1062 = vmul.f32 %v1061, %v1057
        %v1063 = vadd.f32 %v1062, -0.28449672
        %v1064 = vmul.f32 %v1063, %v1057
        %v1065 = vadd.f32 %v1064, 0.2548296
        %v1066 = vmul.f32 %v1065, %v1057
        %v1067 = vsub.f32 0.0, %v1053
        %v1068 = vmul.f32 %v1067, %v1053
        %v1069 = vmul.f32 %v1068, 1.442695
        %v1070 = vpow.pop %v1069
        %v1071 = vmul.f32 %v1066, %v1070
        %v1072 = vsub.f32 1.0, %v1071
        %v1073 = vmul.f32 %v1052, %v1072
        %v1074 = vadd.f32 %v1073, 1.0
        %v1075 = vmul.f32 %v1049, %v1074
        %s1076 = scalar_lea.vmem %s502, 64 [#allocation12]
        %v1077 = vld [vmem:[%s1076] sm:$0xff]
        %v1078 = vld [vmem:[%s1076 + $0x8] sm:$0xff]
        %v1079 = vld [vmem:[%s1076 + $0x10] sm:$0xff]
        %v1080 = vld [vmem:[%s1076 + $0x18] sm:$0xff]
        %s1081 = scalar_lea.vmem %s576, 2
        %v1082 = vld [vmem:[%s1081] sm:$0x1]
        %v1084 = vsel %vm581, %v1075, 0
        %1086 = vmatprep.subr.mxu0 0.0
        %1087 = vmatpush1.msra.mxu0 %v1077
        %1088 = vmatprep.subr.mxu0 0.0
        %1089 = vmatpush1.msra.mxu0 %v1078
        %1090 = vmatprep.subr.mxu0 0.0
        %1091 = vmatpush1.msra.mxu0 %v1079
        %1092 = vmatprep.subr.mxu0 0.0
        %1093 = vmatpush1.msra.mxu0 %v1080
        %1094 = vmatprep.subr.mxu0 0.0
        %1095 = vmatpush1.msra.mxu0 0.0
        %1096 = vmatprep.subr.mxu0 0.0
        %1097 = vmatpush1.msra.mxu0 0.0
        %1098 = vmatprep.subr.mxu0 0.0
        %1099 = vmatpush1.msra.mxu0 0.0
        %1100 = vmatprep.subr.mxu0 0.0
        %1101 = vmatpush1.msra.mxu0 0.0
        %1102 = vmatprep.subr.mxu0 0.0
        %1103 = vmatpush1.msra.mxu0 0.0
        %1104 = vmatprep.subr.mxu0 0.0
        %1105 = vmatpush1.msra.mxu0 0.0
        %1106 = vmatprep.subr.mxu0 0.0
        %1107 = vmatpush1.msra.mxu0 0.0
        %1108 = vmatprep.subr.mxu0 0.0
        %1109 = vmatpush1.msra.mxu0 0.0
        %1110 = vmatprep.subr.mxu0 0.0
        %1111 = vmatpush1.msra.mxu0 0.0
        %1112 = vmatprep.subr.mxu0 0.0
        %1113 = vmatpush1.msra.mxu0 0.0
        %1114 = vmatprep.subr.mxu0 0.0
        %1115 = vmatpush1.msra.mxu0 0.0
        %1116 = vmatprep.subr.mxu0 0.0
        %1117 = vmatpush1.msra.mxu0 0.0
        %1118 = vmatprep.subr.mxu0 0.0
        %1119 = vmatpush1.msra.mxu0 0.0
        %1120 = vmatprep.subr.mxu0 0.0
        %1121 = vmatpush1.msra.mxu0 0.0
        %1122 = vmatprep.subr.mxu0 0.0
        %1123 = vmatpush1.msra.mxu0 0.0
        %1124 = vmatprep.subr.mxu0 0.0
        %1125 = vmatpush1.msra.mxu0 0.0
        %1126 = vmatprep.subr.mxu0 0.0
        %1127 = vmatpush1.msra.mxu0 0.0
        %1128 = vmatprep.subr.mxu0 0.0
        %1129 = vmatpush1.msra.mxu0 0.0
        %1130 = vmatprep.subr.mxu0 0.0
        %1131 = vmatpush1.msra.mxu0 0.0
        %1132 = vmatprep.subr.mxu0 0.0
        %1133 = vmatpush1.msra.mxu0 0.0
        %1134 = vmatprep.subr.mxu0 0.0
        %1135 = vmatpush1.msra.mxu0 0.0
        %1136 = vmatprep.subr.mxu0 0.0
        %1137 = vmatpush1.msra.mxu0 0.0
        %1138 = vmatprep.subr.mxu0 0.0
        %1139 = vmatpush1.msra.mxu0 0.0
        %1140 = vmatprep.subr.mxu0 0.0
        %1141 = vmatpush1.msra.mxu0 0.0
        %1142 = vmatprep.subr.mxu0 0.0
        %1143 = vmatpush1.msra.mxu0 0.0
        %1144 = vmatprep.subr.mxu0 0.0
        %1145 = vmatpush1.msra.mxu0 0.0
        %1146 = vmatprep.subr.mxu0 0.0
        %1147 = vmatpush1.msra.mxu0 0.0
        %1148 = vmatprep.subr.mxu0 0.0
        %1149 = vmatpush1.msra.mxu0 0.0
        %1150 = vmatprep.mubr.f32.mxu0 0.0
        %1151 = vmatmul.mubr.f32.gmra.mrb[0].mxu0 %v1084
        %v1152 = vpop.f32.mrb[0].mxu0
        %v1153 = vadd.f32 %v1082, %v1152
        %v1154 = vpop.f32.mrb[0].mxu0
        %1155 = vdwg.mxu0
        %s1156 = scalar_lea.vmem %s502, 96 [#allocation12]
        %v1157 = vld [vmem:[%s1156] sm:$0xff]
        %v1158 = vld [vmem:[%s1156 + $0x8] sm:$0xff]
        %v1159 = vld [vmem:[%s1156 + $0x10] sm:$0xff]
        %v1160 = vld [vmem:[%s1156 + $0x18] sm:$0xff]
        %s1161 = scalar_lea.vmem %s576, 3
        %v1162 = vld [vmem:[%s1161] sm:$0x1]
        %1163 = vrot.lane.b32.xlu0 %v1075, 96
        %v1164 = vpop.permute.xlu0 %1163
        %v1165 = vsel %vm581, %v1164, 0
        %1167 = vmatprep.subr.mxu0 0.0
        %1168 = vmatpush1.msra.mxu0 %v1157
        %1169 = vmatprep.subr.mxu0 0.0
        %1170 = vmatpush1.msra.mxu0 %v1158
        %1171 = vmatprep.subr.mxu0 0.0
        %1172 = vmatpush1.msra.mxu0 %v1159
        %1173 = vmatprep.subr.mxu0 0.0
        %1174 = vmatpush1.msra.mxu0 %v1160
        %1175 = vmatprep.subr.mxu0 0.0
        %1176 = vmatpush1.msra.mxu0 0.0
        %1177 = vmatprep.subr.mxu0 0.0
        %1178 = vmatpush1.msra.mxu0 0.0
        %1179 = vmatprep.subr.mxu0 0.0
        %1180 = vmatpush1.msra.mxu0 0.0
        %1181 = vmatprep.subr.mxu0 0.0
        %1182 = vmatpush1.msra.mxu0 0.0
        %1183 = vmatprep.subr.mxu0 0.0
        %1184 = vmatpush1.msra.mxu0 0.0
        %1185 = vmatprep.subr.mxu0 0.0
        %1186 = vmatpush1.msra.mxu0 0.0
        %1187 = vmatprep.subr.mxu0 0.0
        %1188 = vmatpush1.msra.mxu0 0.0
        %1189 = vmatprep.subr.mxu0 0.0
        %1190 = vmatpush1.msra.mxu0 0.0
        %1191 = vmatprep.subr.mxu0 0.0
        %1192 = vmatpush1.msra.mxu0 0.0
        %1193 = vmatprep.subr.mxu0 0.0
        %1194 = vmatpush1.msra.mxu0 0.0
        %1195 = vmatprep.subr.mxu0 0.0
        %1196 = vmatpush1.msra.mxu0 0.0
        %1197 = vmatprep.subr.mxu0 0.0
        %1198 = vmatpush1.msra.mxu0 0.0
        %1199 = vmatprep.subr.mxu0 0.0
        %1200 = vmatpush1.msra.mxu0 0.0
        %1201 = vmatprep.subr.mxu0 0.0
        %1202 = vmatpush1.msra.mxu0 0.0
        %1203 = vmatprep.subr.mxu0 0.0
        %1204 = vmatpush1.msra.mxu0 0.0
        %1205 = vmatprep.subr.mxu0 0.0
        %1206 = vmatpush1.msra.mxu0 0.0
        %1207 = vmatprep.subr.mxu0 0.0
        %1208 = vmatpush1.msra.mxu0 0.0
        %1209 = vmatprep.subr.mxu0 0.0
        %1210 = vmatpush1.msra.mxu0 0.0
        %1211 = vmatprep.subr.mxu0 0.0
        %1212 = vmatpush1.msra.mxu0 0.0
        %1213 = vmatprep.subr.mxu0 0.0
        %1214 = vmatpush1.msra.mxu0 0.0
        %1215 = vmatprep.subr.mxu0 0.0
        %1216 = vmatpush1.msra.mxu0 0.0
        %1217 = vmatprep.subr.mxu0 0.0
        %1218 = vmatpush1.msra.mxu0 0.0
        %1219 = vmatprep.subr.mxu0 0.0
        %1220 = vmatpush1.msra.mxu0 0.0
        %1221 = vmatprep.subr.mxu0 0.0
        %1222 = vmatpush1.msra.mxu0 0.0
        %1223 = vmatprep.subr.mxu0 0.0
        %1224 = vmatpush1.msra.mxu0 0.0
        %1225 = vmatprep.subr.mxu0 0.0
        %1226 = vmatpush1.msra.mxu0 0.0
        %1227 = vmatprep.subr.mxu0 0.0
        %1228 = vmatpush1.msra.mxu0 0.0
        %1229 = vmatprep.subr.mxu0 0.0
        %1230 = vmatpush1.msra.mxu0 0.0
        %1231 = vmatprep.mubr.f32.mxu0 0.0
        %1232 = vmatmul.mubr.f32.gmra.mrb[0].mxu0 %v1165
        %v1233 = vpop.f32.mrb[0].mxu0
        %v1234 = vadd.f32 %v1162, %v1233
        %v1235 = vpop.f32.mrb[0].mxu0
        %1236 = vdwg.mxu0
        %s1237 = scalar_lea.vmem %s493, 64 [#allocation10]
        %v1238 = vld [vmem:[%s1237] sm:$0xff]
        %v1239 = vld [vmem:[%s1237 + $0x8] sm:$0xff]
        %v1240 = vld [vmem:[%s1237 + $0x10] sm:$0xff]
        %v1241 = vld [vmem:[%s1237 + $0x18] sm:$0xff]
        %s1242 = scalar_lea.vmem %s572, 2
        %v1243 = vld [vmem:[%s1242] sm:$0x1]
        %v1245 = vsel %vm581, %v704, 0
        %1247 = vmatprep.subr.mxu0 0.0
        %1248 = vmatpush1.msra.mxu0 %v1238
        %1249 = vmatprep.subr.mxu0 0.0
        %1250 = vmatpush1.msra.mxu0 %v1239
        %1251 = vmatprep.subr.mxu0 0.0
        %1252 = vmatpush1.msra.mxu0 %v1240
        %1253 = vmatprep.subr.mxu0 0.0
        %1254 = vmatpush1.msra.mxu0 %v1241
        %1255 = vmatprep.subr.mxu0 0.0
        %1256 = vmatpush1.msra.mxu0 0.0
        %1257 = vmatprep.subr.mxu0 0.0
        %1258 = vmatpush1.msra.mxu0 0.0
        %1259 = vmatprep.subr.mxu0 0.0
        %1260 = vmatpush1.msra.mxu0 0.0
        %1261 = vmatprep.subr.mxu0 0.0
        %1262 = vmatpush1.msra.mxu0 0.0
        %1263 = vmatprep.subr.mxu0 0.0
        %1264 = vmatpush1.msra.mxu0 0.0
        %1265 = vmatprep.subr.mxu0 0.0
        %1266 = vmatpush1.msra.mxu0 0.0
        %1267 = vmatprep.subr.mxu0 0.0
        %1268 = vmatpush1.msra.mxu0 0.0
        %1269 = vmatprep.subr.mxu0 0.0
        %1270 = vmatpush1.msra.mxu0 0.0
        %1271 = vmatprep.subr.mxu0 0.0
        %1272 = vmatpush1.msra.mxu0 0.0
        %1273 = vmatprep.subr.mxu0 0.0
        %1274 = vmatpush1.msra.mxu0 0.0
        %1275 = vmatprep.subr.mxu0 0.0
        %1276 = vmatpush1.msra.mxu0 0.0
        %1277 = vmatprep.subr.mxu0 0.0
        %1278 = vmatpush1.msra.mxu0 0.0
        %1279 = vmatprep.subr.mxu0 0.0
        %1280 = vmatpush1.msra.mxu0 0.0
        %1281 = vmatprep.subr.mxu0 0.0
        %1282 = vmatpush1.msra.mxu0 0.0
        %1283 = vmatprep.subr.mxu0 0.0
        %1284 = vmatpush1.msra.mxu0 0.0
        %1285 = vmatprep.subr.mxu0 0.0
        %1286 = vmatpush1.msra.mxu0 0.0
        %1287 = vmatprep.subr.mxu0 0.0
        %1288 = vmatpush1.msra.mxu0 0.0
        %1289 = vmatprep.subr.mxu0 0.0
        %1290 = vmatpush1.msra.mxu0 0.0
        %1291 = vmatprep.subr.mxu0 0.0
        %1292 = vmatpush1.msra.mxu0 0.0
        %1293 = vmatprep.subr.mxu0 0.0
        %1294 = vmatpush1.msra.mxu0 0.0
        %1295 = vmatprep.subr.mxu0 0.0
        %1296 = vmatpush1.msra.mxu0 0.0
        %1297 = vmatprep.subr.mxu0 0.0
        %1298 = vmatpush1.msra.mxu0 0.0
        %1299 = vmatprep.subr.mxu0 0.0
        %1300 = vmatpush1.msra.mxu0 0.0
        %1301 = vmatprep.subr.mxu0 0.0
        %1302 = vmatpush1.msra.mxu0 0.0
        %1303 = vmatprep.subr.mxu0 0.0
        %1304 = vmatpush1.msra.mxu0 0.0
        %1305 = vmatprep.subr.mxu0 0.0
        %1306 = vmatpush1.msra.mxu0 0.0
        %1307 = vmatprep.subr.mxu0 0.0
        %1308 = vmatpush1.msra.mxu0 0.0
        %1309 = vmatprep.subr.mxu0 0.0
        %1310 = vmatpush1.msra.mxu0 0.0
        %1311 = vmatprep.mubr.f32.mxu0 0.0
        %1312 = vmatmul.mubr.f32.gmra.mrb[0].mxu0 %v1245
        %v1313 = vpop.f32.mrb[0].mxu0
        %v1314 = vadd.f32 %v1243, %v1313
        %v1315 = vpop.f32.mrb[0].mxu0
        %1316 = vdwg.mxu0
        %v1317 = vmul.f32 %v1314, 0.5
        %v1318 = vmul.f32 %v1314, 0.70710677
        %vm1319 = vcmp.ge.f32.partialorder %v1318, 0.0
        %v1320 = vsel %vm1319, 1.0, -1.0
        %v1321 = vand.u32 2147483647, %v1318
        %v1322 = vmul.f32 %v1321, 0.3275911
        %v1323 = vadd.f32 %v1322, 1.0
        %v1324 = vrcp.pop %v1323
        %v1325 = vmul.f32 1.0, %v1324
        %v1326 = vmul.f32 %v1325, 1.0614054
        %v1327 = vadd.f32 %v1326, -1.4531521
        %v1328 = vmul.f32 %v1327, %v1325
        %v1329 = vadd.f32 %v1328, 1.4214138
        %v1330 = vmul.f32 %v1329, %v1325
        %v1331 = vadd.f32 %v1330, -0.28449672
        %v1332 = vmul.f32 %v1331, %v1325
        %v1333 = vadd.f32 %v1332, 0.2548296
        %v1334 = vmul.f32 %v1333, %v1325
        %v1335 = vsub.f32 0.0, %v1321
        %v1336 = vmul.f32 %v1335, %v1321
        %v1337 = vmul.f32 %v1336, 1.442695
        %v1338 = vpow.pop %v1337
        %v1339 = vmul.f32 %v1334, %v1338
        %v1340 = vsub.f32 1.0, %v1339
        %v1341 = vmul.f32 %v1320, %v1340
        %v1342 = vadd.f32 %v1341, 1.0
        %v1343 = vmul.f32 %v1317, %v1342
        %s1344 = scalar_lea.vmem %s502, 128 [#allocation12]
        %v1345 = vld [vmem:[%s1344] sm:$0xff]
        %v1346 = vld [vmem:[%s1344 + $0x8] sm:$0xff]
        %v1347 = vld [vmem:[%s1344 + $0x10] sm:$0xff]
        %v1348 = vld [vmem:[%s1344 + $0x18] sm:$0xff]
        %s1349 = scalar_lea.vmem %s576, 4
        %v1350 = vld [vmem:[%s1349] sm:$0x1]
        %v1352 = vsel %vm581, %v1343, 0
        %1354 = vmatprep.subr.mxu0 0.0
        %1355 = vmatpush1.msra.mxu0 %v1345
        %1356 = vmatprep.subr.mxu0 0.0
        %1357 = vmatpush1.msra.mxu0 %v1346
        %1358 = vmatprep.subr.mxu0 0.0
        %1359 = vmatpush1.msra.mxu0 %v1347
        %1360 = vmatprep.subr.mxu0 0.0
        %1361 = vmatpush1.msra.mxu0 %v1348
        %1362 = vmatprep.subr.mxu0 0.0
        %1363 = vmatpush1.msra.mxu0 0.0
        %1364 = vmatprep.subr.mxu0 0.0
        %1365 = vmatpush1.msra.mxu0 0.0
        %1366 = vmatprep.subr.mxu0 0.0
        %1367 = vmatpush1.msra.mxu0 0.0
        %1368 = vmatprep.subr.mxu0 0.0
        %1369 = vmatpush1.msra.mxu0 0.0
        %1370 = vmatprep.subr.mxu0 0.0
        %1371 = vmatpush1.msra.mxu0 0.0
        %1372 = vmatprep.subr.mxu0 0.0
        %1373 = vmatpush1.msra.mxu0 0.0
        %1374 = vmatprep.subr.mxu0 0.0
        %1375 = vmatpush1.msra.mxu0 0.0
        %1376 = vmatprep.subr.mxu0 0.0
        %1377 = vmatpush1.msra.mxu0 0.0
        %1378 = vmatprep.subr.mxu0 0.0
        %1379 = vmatpush1.msra.mxu0 0.0
        %1380 = vmatprep.subr.mxu0 0.0
        %1381 = vmatpush1.msra.mxu0 0.0
        %1382 = vmatprep.subr.mxu0 0.0
        %1383 = vmatpush1.msra.mxu0 0.0
        %1384 = vmatprep.subr.mxu0 0.0
        %1385 = vmatpush1.msra.mxu0 0.0
        %1386 = vmatprep.subr.mxu0 0.0
        %1387 = vmatpush1.msra.mxu0 0.0
        %1388 = vmatprep.subr.mxu0 0.0
        %1389 = vmatpush1.msra.mxu0 0.0
        %1390 = vmatprep.subr.mxu0 0.0
        %1391 = vmatpush1.msra.mxu0 0.0
        %1392 = vmatprep.subr.mxu0 0.0
        %1393 = vmatpush1.msra.mxu0 0.0
        %1394 = vmatprep.subr.mxu0 0.0
        %1395 = vmatpush1.msra.mxu0 0.0
        %1396 = vmatprep.subr.mxu0 0.0
        %1397 = vmatpush1.msra.mxu0 0.0
        %1398 = vmatprep.subr.mxu0 0.0
        %1399 = vmatpush1.msra.mxu0 0.0
        %1400 = vmatprep.subr.mxu0 0.0
        %1401 = vmatpush1.msra.mxu0 0.0
        %1402 = vmatprep.subr.mxu0 0.0
        %1403 = vmatpush1.msra.mxu0 0.0
        %1404 = vmatprep.subr.mxu0 0.0
        %1405 = vmatpush1.msra.mxu0 0.0
        %1406 = vmatprep.subr.mxu0 0.0
        %1407 = vmatpush1.msra.mxu0 0.0
        %1408 = vmatprep.subr.mxu0 0.0
        %1409 = vmatpush1.msra.mxu0 0.0
        %1410 = vmatprep.subr.mxu0 0.0
        %1411 = vmatpush1.msra.mxu0 0.0
        %1412 = vmatprep.subr.mxu0 0.0
        %1413 = vmatpush1.msra.mxu0 0.0
        %1414 = vmatprep.subr.mxu0 0.0
        %1415 = vmatpush1.msra.mxu0 0.0
        %1416 = vmatprep.subr.mxu0 0.0
        %1417 = vmatpush1.msra.mxu0 0.0
        %1418 = vmatprep.mubr.f32.mxu0 0.0
        %1419 = vmatmul.mubr.f32.gmra.mrb[0].mxu0 %v1352
        %v1420 = vpop.f32.mrb[0].mxu0
        %v1421 = vadd.f32 %v1350, %v1420
        %v1422 = vpop.f32.mrb[0].mxu0
        %1423 = vdwg.mxu0
        %s1424 = scalar_lea.vmem %s502, 160 [#allocation12]
        %v1425 = vld [vmem:[%s1424] sm:$0xff]
        %v1426 = vld [vmem:[%s1424 + $0x8] sm:$0xff]
        %v1427 = vld [vmem:[%s1424 + $0x10] sm:$0xff]
        %v1428 = vld [vmem:[%s1424 + $0x18] sm:$0xff]
        %s1429 = scalar_lea.vmem %s576, 5
        %v1430 = vld [vmem:[%s1429] sm:$0x1]
        %1431 = vrot.lane.b32.xlu0 %v1343, 96
        %v1432 = vpop.permute.xlu0 %1431
        %v1433 = vsel %vm581, %v1432, 0
        %1435 = vmatprep.subr.mxu0 0.0
        %1436 = vmatpush1.msra.mxu0 %v1425
        %1437 = vmatprep.subr.mxu0 0.0
        %1438 = vmatpush1.msra.mxu0 %v1426
        %1439 = vmatprep.subr.mxu0 0.0
        %1440 = vmatpush1.msra.mxu0 %v1427
        %1441 = vmatprep.subr.mxu0 0.0
        %1442 = vmatpush1.msra.mxu0 %v1428
        %1443 = vmatprep.subr.mxu0 0.0
        %1444 = vmatpush1.msra.mxu0 0.0
        %1445 = vmatprep.subr.mxu0 0.0
        %1446 = vmatpush1.msra.mxu0 0.0
        %1447 = vmatprep.subr.mxu0 0.0
        %1448 = vmatpush1.msra.mxu0 0.0
        %1449 = vmatprep.subr.mxu0 0.0
        %1450 = vmatpush1.msra.mxu0 0.0
        %1451 = vmatprep.subr.mxu0 0.0
        %1452 = vmatpush1.msra.mxu0 0.0
        %1453 = vmatprep.subr.mxu0 0.0
        %1454 = vmatpush1.msra.mxu0 0.0
        %1455 = vmatprep.subr.mxu0 0.0
        %1456 = vmatpush1.msra.mxu0 0.0
        %1457 = vmatprep.subr.mxu0 0.0
        %1458 = vmatpush1.msra.mxu0 0.0
        %1459 = vmatprep.subr.mxu0 0.0
        %1460 = vmatpush1.msra.mxu0 0.0
        %1461 = vmatprep.subr.mxu0 0.0
        %1462 = vmatpush1.msra.mxu0 0.0
        %1463 = vmatprep.subr.mxu0 0.0
        %1464 = vmatpush1.msra.mxu0 0.0
        %1465 = vmatprep.subr.mxu0 0.0
        %1466 = vmatpush1.msra.mxu0 0.0
        %1467 = vmatprep.subr.mxu0 0.0
        %1468 = vmatpush1.msra.mxu0 0.0
        %1469 = vmatprep.subr.mxu0 0.0
        %1470 = vmatpush1.msra.mxu0 0.0
        %1471 = vmatprep.subr.mxu0 0.0
        %1472 = vmatpush1.msra.mxu0 0.0
        %1473 = vmatprep.subr.mxu0 0.0
        %1474 = vmatpush1.msra.mxu0 0.0
        %1475 = vmatprep.subr.mxu0 0.0
        %1476 = vmatpush1.msra.mxu0 0.0
        %1477 = vmatprep.subr.mxu0 0.0
        %1478 = vmatpush1.msra.mxu0 0.0
        %1479 = vmatprep.subr.mxu0 0.0
        %1480 = vmatpush1.msra.mxu0 0.0
        %1481 = vmatprep.subr.mxu0 0.0
        %1482 = vmatpush1.msra.mxu0 0.0
        %1483 = vmatprep.subr.mxu0 0.0
        %1484 = vmatpush1.msra.mxu0 0.0
        %1485 = vmatprep.subr.mxu0 0.0
        %1486 = vmatpush1.msra.mxu0 0.0
        %1487 = vmatprep.subr.mxu0 0.0
        %1488 = vmatpush1.msra.mxu0 0.0
        %1489 = vmatprep.subr.mxu0 0.0
        %1490 = vmatpush1.msra.mxu0 0.0
        %1491 = vmatprep.subr.mxu0 0.0
        %1492 = vmatpush1.msra.mxu0 0.0
        %1493 = vmatprep.subr.mxu0 0.0
        %1494 = vmatpush1.msra.mxu0 0.0
        %1495 = vmatprep.subr.mxu0 0.0
        %1496 = vmatpush1.msra.mxu0 0.0
        %1497 = vmatprep.subr.mxu0 0.0
        %1498 = vmatpush1.msra.mxu0 0.0
        %1499 = vmatprep.mubr.f32.mxu0 0.0
        %1500 = vmatmul.mubr.f32.gmra.mrb[0].mxu0 %v1433
        %v1501 = vpop.f32.mrb[0].mxu0
        %v1502 = vadd.f32 %v1430, %v1501
        %v1503 = vpop.f32.mrb[0].mxu0
        %1504 = vdwg.mxu0
        %v1505 = vadd.f32 %v885, %v1153
        %v1506 = vmul.f32 %v1505, 0.5
        %v1507 = vadd.f32 %v1506, 2.0
        %v1508 = vadd.f32 %v1507, %v1421
        %v1509 = vadd.f32 %v966, %v1234
        %v1510 = vmul.f32 %v1509, 0.5
        %v1511 = vadd.f32 %v1510, %v1502
        %v1512 = vlaneseq
        %v1513 = vshrl.u32 %v1512, 7
        %v1514 = vcvt.s32.f32 %v1513
        %v1515 = vlaneseq
        %v1516 = vand.u32 %v1515, 127
        %v1517 = vcvt.s32.f32 %v1516
        %v1518 = vstv %s654
        %vm1519 = vcmp.lt.f32.partialorder %v1514, %v1518
        %v1520 = vsel %vm1519, 1, 0
        %v1521 = vcvt.s32.f32 %v1520
        %v1522 = vmul.f32 %v1514, %v1517
        %v1523 = vmul.f32 %v1522, %v703
        %v1524 = vfloor.f32 %v1523
        %v1525 = vmul.f32 %v1524, %v1518
        %v1526 = vsub.f32 %v1522, %v1525
        %s1527 = smul.f32 %s675, 6.2831855
        %v1528 = vstv %s1527
        %v1529 = vmul.f32 %v1528, %v1526
        %v1530 = vand.u32 2147483647, %v1529
        %vm1531 = vcmp.le.f32.partialorder %v1530, 0.7853982
        %vm1532 = vcmp.lt.s32.totalorder %v1529, 0
        %v1533 = vand.u32 %v1529, 2139095040
        %v1534 = vshrl.u32 %v1533, 23
        %v1535 = vsub.s32 %v1534, 127
        %v1536 = vand.u32 2147483647, %v1529
        %v1537 = vand.u32 %v1536, 8388607
        %v1538 = vor.u32 %v1537, 8388608
        %v1539 = vsub.s32 0, %v1538
        %v1540 = vadd.s32 %v1535, 1
        %vm1541 = vcmp.gt.s32.totalorder %v1540, 0
        %v1542 = vsel %vm1541, %v1540, 0
        %v1543 = vshrl.u32 %v1542, 5
        %v1544 = vand.u32 %v1542, 31
        %v1545 = vsub.s32 32, %v1544
        %v1546 = vshrl.u32 683565275, %v1545
        %v1547 = vshll.u32 683565275, %v1544
        %v1548 = vshrl.u32 2475754826, %v1545
        %v1549 = vor.u32 %v1547, %v1548
        %v1550 = vshll.u32 2475754826, %v1544
        %v1551 = vshrl.u32 2131351028, %v1545
        %v1552 = vor.u32 %v1550, %v1551
        %v1553 = vshll.u32 2131351028, %v1544
        %v1554 = vshrl.u32 2102212464, %v1545
        %v1555 = vor.u32 %v1553, %v1554
        %v1556 = vshll.u32 2102212464, %v1544
        %v1557 = vshrl.u32 920167782, %v1545
        %v1558 = vor.u32 %v1556, %v1557
        %v1559 = vshll.u32 920167782, %v1544
        %v1560 = vshrl.u32 1326507024, %v1545
        %v1561 = vor.u32 %v1559, %v1560
        %vm1562 = vcmp.lt.s32.totalorder %v1543, 1
        %vm1563 = vcmp.lt.s32.totalorder %v1543, 2
        %vm1564 = vcmp.lt.s32.totalorder %v1543, 3
        %vm1565 = vcmp.lt.s32.totalorder %v1543, 4
        %v1566 = vsel %vm1562, %v1546, %v1549
        %v1567 = vsel %vm1565, %v1555, 2102212464
        %v1568 = vsel %vm1564, %v1552, %v1567
        %v1569 = vsel %vm1563, %v1566, %v1568
        %v1570 = vsel %vm1562, %v1549, %v1552
        %v1571 = vsel %vm1565, %v1558, 920167782
        %v1572 = vsel %vm1564, %v1555, %v1571
        %v1573 = vsel %vm1563, %v1570, %v1572
        %v1574 = vsel %vm1562, %v1552, %v1555
        %v1575 = vsel %vm1565, %v1561, 1326507024
        %v1576 = vsel %vm1564, %v1558, %v1575
        %v1577 = vsel %vm1563, %v1574, %v1576
        %v1578 = vshll.u32 %v1538, 8
        %v1579 = vmul.u32.u64.compose %v1578, %v1577
        %v1580 = vextract.low.u32 %v1579
        %v1581 = vextract.high.u32 %v1579
        %v1582 = vmul.u32.u64.compose %v1578, %v1573
        %v1583 = vextract.low.u32 %v1582
        %v1584 = vextract.high.u32 %v1582
        %v1585 = vmul.u32 %v1578, %v1569
        %v1586 = vadd.s32 %v1581, %v1583
        %vm1587 = vc.u32 %v1581, %v1583
        %v1588 = vadd.s32 %v1584, 1
        %v1589 = vsel %vm1587, %v1588, %v1584
        %v1590 = vadd.s32 %v1585, %v1589
        %v1591 = vadd.s32 %v1590, 536870912
        %v1592 = vshrl.u32 %v1591, 30
        %v1593 = vshll.u32 %v1592, 30
        %v1594 = vsub.s32 %v1590, %v1593
        %vm1595 = vcmp.lt.s32.totalorder %v1594, 0
        %v1596 = vsub.s32 0, %v1594
        %v1597 = vsel %vm1595, %v1596, %v1594
        %v1598 = vclz %v1597
        %v1599 = vsub.s32 %v1598, 2
        %vm1600 = vcmp.gt.s32.totalorder 0, %v1599
        %v1601 = vsel %vm1600, 0, %v1599
        %v1602 = vsub.s32 32, %v1601
        %v1603 = vshll.u32 %v1594, %v1601
        %v1604 = vshrl.u32 %v1586, %v1602
        %v1605 = vor.u32 %v1603, %v1604
        %v1606 = vsub.s32 4294967266, %v1601
        %v1607 = vadd.s32 %v1606, 127
        %v1608 = vshll.u32 %v1607, 23
        %v1609 = vor.u32 4788187, %v1608
        %v1610 = vand.u32 2147483647, %v1609
        %v1612 = vcvt.s32.f32 %v1605
        %v1613 = vmul.f32 %v1612, %v1610
        %v1614 = vxor.u32 %v1613, 2147483648
        %v1615 = vsel %vm1532, %v1614, %v1613
        %v1616 = vsub.s32 4, %v1592
        %v1617 = vsel %vm1532, %v1616, %v1592
        %v1618 = vsel %vm1531, %v1529, %v1615
        %v1619 = vsel %vm1531, 0, %v1617
        %v1620 = vcosq.f32.pop %v1618
        %v1621 = vsinq.f32.pop %v1618
        %vm1622 = vweird.f32 %v1529
        %v1623 = vand.u32 %v1619, 3
        %vm1624 = vcmp.lt.s32.totalorder %v1623, 2
        %vm1625 = vcmp.eq.s32.totalorder %v1623, 0
        %v1626 = vxor.u32 %v1621, 2147483648
        %v1627 = vsel %vm1625, %v1620, %v1626
        %vm1628 = vcmp.eq.s32.totalorder %v1623, 2
        %v1629 = vxor.u32 %v1620, 2147483648
        %v1630 = vsel %vm1628, %v1629, %v1621
        %v1631 = vsel %vm1624, %v1627, %v1630
        %v1632 = vsel %vm1622, nan, %v1631
        %v1633 = vpack.c.bf16 %v1632, %v1632
        %v1634 = vand.u32 2147483647, %v1529
        %vm1635 = vcmp.le.f32.partialorder %v1634, 0.7853982
        %vm1636 = vcmp.lt.s32.totalorder %v1529, 0
        %v1637 = vand.u32 %v1529, 2139095040
        %v1638 = vshrl.u32 %v1637, 23
        %v1639 = vsub.s32 %v1638, 127
        %v1640 = vand.u32 2147483647, %v1529
        %v1641 = vand.u32 %v1640, 8388607
        %v1642 = vor.u32 %v1641, 8388608
        %v1643 = vsub.s32 0, %v1642
        %v1644 = vadd.s32 %v1639, 1
        %vm1645 = vcmp.gt.s32.totalorder %v1644, 0
        %v1646 = vsel %vm1645, %v1644, 0
        %v1647 = vshrl.u32 %v1646, 5
        %v1648 = vand.u32 %v1646, 31
        %v1649 = vsub.s32 32, %v1648
        %v1650 = vshrl.u32 683565275, %v1649
        %v1651 = vshll.u32 683565275, %v1648
        %v1652 = vshrl.u32 2475754826, %v1649
        %v1653 = vor.u32 %v1651, %v1652
        %v1654 = vshll.u32 2475754826, %v1648
        %v1655 = vshrl.u32 2131351028, %v1649
        %v1656 = vor.u32 %v1654, %v1655
        %v1657 = vshll.u32 2131351028, %v1648
        %v1658 = vshrl.u32 2102212464, %v1649
        %v1659 = vor.u32 %v1657, %v1658
        %v1660 = vshll.u32 2102212464, %v1648
        %v1661 = vshrl.u32 920167782, %v1649
        %v1662 = vor.u32 %v1660, %v1661
        %v1663 = vshll.u32 920167782, %v1648
        %v1664 = vshrl.u32 1326507024, %v1649
        %v1665 = vor.u32 %v1663, %v1664
        %vm1666 = vcmp.lt.s32.totalorder %v1647, 1
        %vm1667 = vcmp.lt.s32.totalorder %v1647, 2
        %vm1668 = vcmp.lt.s32.totalorder %v1647, 3
        %vm1669 = vcmp.lt.s32.totalorder %v1647, 4
        %v1670 = vsel %vm1666, %v1650, %v1653
        %v1671 = vsel %vm1669, %v1659, 2102212464
        %v1672 = vsel %vm1668, %v1656, %v1671
        %v1673 = vsel %vm1667, %v1670, %v1672
        %v1674 = vsel %vm1666, %v1653, %v1656
        %v1675 = vsel %vm1669, %v1662, 920167782
        %v1676 = vsel %vm1668, %v1659, %v1675
        %v1677 = vsel %vm1667, %v1674, %v1676
        %v1678 = vsel %vm1666, %v1656, %v1659
        %v1679 = vsel %vm1669, %v1665, 1326507024
        %v1680 = vsel %vm1668, %v1662, %v1679
        %v1681 = vsel %vm1667, %v1678, %v1680
        %v1682 = vshll.u32 %v1642, 8
        %v1683 = vmul.u32.u64.compose %v1682, %v1681
        %v1684 = vextract.low.u32 %v1683
        %v1685 = vextract.high.u32 %v1683
        %v1686 = vmul.u32.u64.compose %v1682, %v1677
        %v1687 = vextract.low.u32 %v1686
        %v1688 = vextract.high.u32 %v1686
        %v1689 = vmul.u32 %v1682, %v1673
        %v1690 = vadd.s32 %v1685, %v1687
        %vm1691 = vc.u32 %v1685, %v1687
        %v1692 = vadd.s32 %v1688, 1
        %v1693 = vsel %vm1691, %v1692, %v1688
        %v1694 = vadd.s32 %v1689, %v1693
        %v1695 = vadd.s32 %v1694, 536870912
        %v1696 = vshrl.u32 %v1695, 30
        %v1697 = vshll.u32 %v1696, 30
        %v1698 = vsub.s32 %v1694, %v1697
        %vm1699 = vcmp.lt.s32.totalorder %v1698, 0
        %v1700 = vsub.s32 0, %v1698
        %v1701 = vsel %vm1699, %v1700, %v1698
        %v1702 = vclz %v1701
        %v1703 = vsub.s32 %v1702, 2
        %vm1704 = vcmp.gt.s32.totalorder 0, %v1703
        %v1705 = vsel %vm1704, 0, %v1703
        %v1706 = vsub.s32 32, %v1705
        %v1707 = vshll.u32 %v1698, %v1705
        %v1708 = vshrl.u32 %v1690, %v1706
        %v1709 = vor.u32 %v1707, %v1708
        %v1710 = vsub.s32 4294967266, %v1705
        %v1711 = vadd.s32 %v1710, 127
        %v1712 = vshll.u32 %v1711, 23
        %v1713 = vor.u32 4788187, %v1712
        %v1714 = vand.u32 2147483647, %v1713
        %v1716 = vcvt.s32.f32 %v1709
        %v1717 = vmul.f32 %v1716, %v1714
        %v1718 = vxor.u32 %v1717, 2147483648
        %v1719 = vsel %vm1636, %v1718, %v1717
        %v1720 = vsub.s32 4, %v1696
        %v1721 = vsel %vm1636, %v1720, %v1696
        %v1722 = vsel %vm1635, %v1529, %v1719
        %v1723 = vsel %vm1635, 0, %v1721
        %v1724 = vcosq.f32.pop %v1722
        %v1725 = vsinq.f32.pop %v1722
        %vm1726 = vweird.f32 %v1529
        %v1727 = vadd.s32 %v1723, 3
        %v1728 = vand.u32 %v1727, 3
        %vm1729 = vcmp.lt.s32.totalorder %v1728, 2
        %vm1730 = vcmp.eq.s32.totalorder %v1728, 0
        %v1731 = vxor.u32 %v1725, 2147483648
        %v1732 = vsel %vm1730, %v1724, %v1731
        %vm1733 = vcmp.eq.s32.totalorder %v1728, 2
        %v1734 = vxor.u32 %v1724, 2147483648
        %v1735 = vsel %vm1733, %v1734, %v1725
        %v1736 = vsel %vm1729, %v1732, %v1735
        %v1737 = vsel %vm1726, nan, %v1736
        %v1738 = vpack.c.bf16 %v1737, %v1737
        %v1739 = vmul.f32 %v609, %v1521
        %v1740 = vpack.c.bf16 %v1739, %v1739
        %vm1741 = vcmask 64512
        %v1743 = vsel %vm1741, %v1633, 0
        %vm1745 = vcmask 1043456
        %v1747 = vsel %vm1745, %v1740, 0
        %1749 = vmatprep.subr.bf16.mxu0 0
        %1750 = vmatpush1.bf16.msra.mxu0 %v1747
        %1751 = vmatprep.subr.bf16.mxu0 0
        %1752 = vmatpush1.bf16.msra.mxu0 0
        %1753 = vmatprep.subr.bf16.mxu0 0
        %1754 = vmatpush1.bf16.msra.mxu0 0
        %1755 = vmatprep.subr.bf16.mxu0 0
        %1756 = vmatpush1.bf16.msra.mxu0 0
        %1757 = vmatprep.subr.bf16.mxu0 0
        %1758 = vmatpush1.bf16.msra.mxu0 0
        %1759 = vmatprep.subr.bf16.mxu0 0
        %1760 = vmatpush1.bf16.msra.mxu0 0
        %1761 = vmatprep.subr.bf16.mxu0 0
        %1762 = vmatpush1.bf16.msra.mxu0 0
        %1763 = vmatprep.subr.bf16.mxu0 0
        %1764 = vmatpush1.bf16.msra.mxu0 0
        %1765 = vmatprep.subr.bf16.mxu0 0
        %1766 = vmatpush1.bf16.msra.mxu0 0
        %1767 = vmatprep.subr.bf16.mxu0 0
        %1768 = vmatpush1.bf16.msra.mxu0 0
        %1769 = vmatprep.subr.bf16.mxu0 0
        %1770 = vmatpush1.bf16.msra.mxu0 0
        %1771 = vmatprep.subr.bf16.mxu0 0
        %1772 = vmatpush1.bf16.msra.mxu0 0
        %1773 = vmatprep.subr.bf16.mxu0 0
        %1774 = vmatpush1.bf16.msra.mxu0 0
        %1775 = vmatprep.subr.bf16.mxu0 0
        %1776 = vmatpush1.bf16.msra.mxu0 0
        %1777 = vmatprep.subr.bf16.mxu0 0
        %1778 = vmatpush1.bf16.msra.mxu0 0
        %1779 = vmatprep.subr.bf16.mxu0 0
        %1780 = vmatpush1.bf16.msra.mxu0 0
        %1781 = vmatprep.mubr.bf16.mxu0 0
        %1782 = vmatmul.mubr.bf16.gmra.mrb[0].mxu0 %v1743
        %v1783 = vpop.f32.mrb[0].mxu0
        %v1784 = vadd.f32 0.0, %v1783
        %v1785 = vpop.f32.mrb[0].mxu0
        %v1786 = vpop.f32.mrb[0].mxu0
        %v1787 = vpop.f32.mrb[0].mxu0
        %1788 = vdwg.mxu0
        %v1790 = vsel %vm1741, %v1738, 0
        %1792 = vmatprep.subr.bf16.mxu0 0
        %1793 = vmatpush1.bf16.msra.mxu0 %v1747
        %1794 = vmatprep.subr.bf16.mxu0 0
        %1795 = vmatpush1.bf16.msra.mxu0 0
        %1796 = vmatprep.subr.bf16.mxu0 0
        %1797 = vmatpush1.bf16.msra.mxu0 0
        %1798 = vmatprep.subr.bf16.mxu0 0
        %1799 = vmatpush1.bf16.msra.mxu0 0
        %1800 = vmatprep.subr.bf16.mxu0 0
        %1801 = vmatpush1.bf16.msra.mxu0 0
        %1802 = vmatprep.subr.bf16.mxu0 0
        %1803 = vmatpush1.bf16.msra.mxu0 0
        %1804 = vmatprep.subr.bf16.mxu0 0
        %1805 = vmatpush1.bf16.msra.mxu0 0
        %1806 = vmatprep.subr.bf16.mxu0 0
        %1807 = vmatpush1.bf16.msra.mxu0 0
        %1808 = vmatprep.subr.bf16.mxu0 0
        %1809 = vmatpush1.bf16.msra.mxu0 0
        %1810 = vmatprep.subr.bf16.mxu0 0
        %1811 = vmatpush1.bf16.msra.mxu0 0
        %1812 = vmatprep.subr.bf16.mxu0 0
        %1813 = vmatpush1.bf16.msra.mxu0 0
        %1814 = vmatprep.subr.bf16.mxu0 0
        %1815 = vmatpush1.bf16.msra.mxu0 0
        %1816 = vmatprep.subr.bf16.mxu0 0
        %1817 = vmatpush1.bf16.msra.mxu0 0
        %1818 = vmatprep.subr.bf16.mxu0 0
        %1819 = vmatpush1.bf16.msra.mxu0 0
        %1820 = vmatprep.subr.bf16.mxu0 0
        %1821 = vmatpush1.bf16.msra.mxu0 0
        %1822 = vmatprep.subr.bf16.mxu0 0
        %1823 = vmatpush1.bf16.msra.mxu0 0
        %1824 = vmatprep.mubr.bf16.mxu0 0
        %1825 = vmatmul.mubr.bf16.gmra.mrb[0].mxu0 %v1790
        %v1826 = vpop.f32.mrb[0].mxu0
        %v1827 = vadd.f32 0.0, %v1826
        %v1828 = vpop.f32.mrb[0].mxu0
        %v1829 = vpop.f32.mrb[0].mxu0
        %v1830 = vpop.f32.mrb[0].mxu0
        %1831 = vdwg.mxu0
        %v1832 = vlaneseq
        %v1833 = vshrl.u32 %v1832, 7
        %v1834 = vsub.s32 0, %v1833
        %v1835 = vrot.slane %v1508, %v1834
        %v1836 = vmul.f32 %v1784, %v1835
        %v1837 = vlaneseq
        %v1838 = vshrl.u32 %v1837, 7
        %v1839 = vsub.s32 0, %v1838
        %v1840 = vrot.slane %v1511, %v1839
        %v1841 = vadd.f32 %v1836, %v1840
        %v1842 = vmul.f32 %v1841, %v1521
        %v1843 = vpack.c.bf16 %v1842, %v1842
        %v1844 = vmul.f32 %v1827, %v1835
        %v1845 = vmul.f32 %v1844, %v1521
        %v1846 = vpack.c.bf16 %v1845, %v1845
        %v1848 = vsel %vm1745, %v1846, 0
        %1850 = vmatprep.subr.bf16.mxu0 0
        %1851 = vmatpush1.bf16.msra.mxu0 %v1848
        %1852 = vmatprep.subr.bf16.mxu0 0
        %1853 = vmatpush1.bf16.msra.mxu0 0
        %1854 = vmatprep.subr.bf16.mxu0 0
        %1855 = vmatpush1.bf16.msra.mxu0 0
        %1856 = vmatprep.subr.bf16.mxu0 0
        %1857 = vmatpush1.bf16.msra.mxu0 0
        %1858 = vmatprep.subr.bf16.mxu0 0
        %1859 = vmatpush1.bf16.msra.mxu0 0
        %1860 = vmatprep.subr.bf16.mxu0 0
        %1861 = vmatpush1.bf16.msra.mxu0 0
        %1862 = vmatprep.subr.bf16.mxu0 0
        %1863 = vmatpush1.bf16.msra.mxu0 0
        %1864 = vmatprep.subr.bf16.mxu0 0
        %1865 = vmatpush1.bf16.msra.mxu0 0
        %1866 = vmatprep.subr.bf16.mxu0 0
        %1867 = vmatpush1.bf16.msra.mxu0 0
        %1868 = vmatprep.subr.bf16.mxu0 0
        %1869 = vmatpush1.bf16.msra.mxu0 0
        %1870 = vmatprep.subr.bf16.mxu0 0
        %1871 = vmatpush1.bf16.msra.mxu0 0
        %1872 = vmatprep.subr.bf16.mxu0 0
        %1873 = vmatpush1.bf16.msra.mxu0 0
        %1874 = vmatprep.subr.bf16.mxu0 0
        %1875 = vmatpush1.bf16.msra.mxu0 0
        %1876 = vmatprep.subr.bf16.mxu0 0
        %1877 = vmatpush1.bf16.msra.mxu0 0
        %1878 = vmatprep.subr.bf16.mxu0 0
        %1879 = vmatpush1.bf16.msra.mxu0 0
        %1880 = vmatprep.subr.bf16.mxu0 0
        %1881 = vmatpush1.bf16.msra.mxu0 0
        %1882 = vmatprep.mubr.bf16.mxu0 0
        %1883 = vmatmul.mubr.bf16.gmra.mrb[0].mxu0 %v1790
        %v1884 = vpop.f32.mrb[0].mxu0
        %v1885 = vadd.f32 0.0, %v1884
        %v1886 = vpop.f32.mrb[0].mxu0
        %v1887 = vpop.f32.mrb[0].mxu0
        %v1888 = vpop.f32.mrb[0].mxu0
        %1889 = vdwg.mxu0
        %v1891 = vsel %vm1745, %v1843, 0
        %1893 = vmatprep.subr.bf16.mxu0 0
        %1894 = vmatpush1.bf16.msra.mxu0 %v1891
        %1895 = vmatprep.subr.bf16.mxu0 0
        %1896 = vmatpush1.bf16.msra.mxu0 0
        %1897 = vmatprep.subr.bf16.mxu0 0
        %1898 = vmatpush1.bf16.msra.mxu0 0
        %1899 = vmatprep.subr.bf16.mxu0 0
        %1900 = vmatpush1.bf16.msra.mxu0 0
        %1901 = vmatprep.subr.bf16.mxu0 0
        %1902 = vmatpush1.bf16.msra.mxu0 0
        %1903 = vmatprep.subr.bf16.mxu0 0
        %1904 = vmatpush1.bf16.msra.mxu0 0
        %1905 = vmatprep.subr.bf16.mxu0 0
        %1906 = vmatpush1.bf16.msra.mxu0 0
        %1907 = vmatprep.subr.bf16.mxu0 0
        %1908 = vmatpush1.bf16.msra.mxu0 0
        %1909 = vmatprep.subr.bf16.mxu0 0
        %1910 = vmatpush1.bf16.msra.mxu0 0
        %1911 = vmatprep.subr.bf16.mxu0 0
        %1912 = vmatpush1.bf16.msra.mxu0 0
        %1913 = vmatprep.subr.bf16.mxu0 0
        %1914 = vmatpush1.bf16.msra.mxu0 0
        %1915 = vmatprep.subr.bf16.mxu0 0
        %1916 = vmatpush1.bf16.msra.mxu0 0
        %1917 = vmatprep.subr.bf16.mxu0 0
        %1918 = vmatpush1.bf16.msra.mxu0 0
        %1919 = vmatprep.subr.bf16.mxu0 0
        %1920 = vmatpush1.bf16.msra.mxu0 0
        %1921 = vmatprep.subr.bf16.mxu0 0
        %1922 = vmatpush1.bf16.msra.mxu0 0
        %1923 = vmatprep.subr.bf16.mxu0 0
        %1924 = vmatpush1.bf16.msra.mxu0 0
        %1925 = vmatprep.mubr.bf16.mxu0 0
        %1926 = vmatmul.mubr.bf16.gmra.mrb[0].mxu0 %v1743
        %v1927 = vpop.f32.mrb[0].mxu0
        %v1928 = vadd.f32 %v1885, %v1927
        %v1929 = vpop.f32.mrb[0].mxu0
        %v1930 = vpop.f32.mrb[0].mxu0
        %v1931 = vpop.f32.mrb[0].mxu0
        %1932 = vdwg.mxu0
        %v1933 = vmul.f32 %v703, %v1521
        %v1934 = vmul.f32 %v1928, %v1933
        %v1935 = vadd.f32 %v1934, %v580
        %1936 = vst.msk [vmem:[%s564] sm:$0xff] %vm581, %v1935
        %s1937 = sand.u32 %s297, 1
        %s1938 = scalar_lea.sflag [#allocation6], %s1937
        %s1939 = sand.u32 %s297, 1
        %s1940 = smul.addr %s1939, 8
        %s1941 = scalar_lea.vmem [#allocation13], %s1940
        // Predicated region
        $region77: #{tpu_custom_call.1} parent=55 // pred_check
          %p1942 = pneg %p307
        $region78: #{tpu_custom_call.1} parent=55 // pred_check_branch
          %1944 = sbr.rel (%p1942) target = $region80
        $region79: #{tpu_custom_call.1} parent=55 // pred_region
          %s1946 = ssub.s32 128, 128
          %1947 = vsyncadd %s1938, %s1946
          %s1948 = smul.addr %s42, 2
          %s1949 = sadd.s32 %s41, %s1948
          %s1950 = smul.addr %s1949, 128
          %s1951 = scalar_lea.hbm %s10, %s1950
          %s1953 = sshll.u32 %s1941, 4
          %s1954 = int_to_ptr.vmem [resolvable:$true] %s1953
          %1956 = dma.vmem_to_hbm [thread:$0]  %s1954, 128, %s1951, %s1938
        $region80: #{tpu_custom_call.1} parent=55 // pred_fallthru
          _
      $region56: #{tpu_custom_call.1} parent=5 // pred_fallthru
        _
      %p1957 = scmp.le.s32.totalorder 2, %s32
      // Predicated region
      $region81: #{tpu_custom_call.1} parent=5 // pred_check
        %p1958 = pneg %p1957
      $region82: #{tpu_custom_call.1} parent=5 // pred_check_branch
        %1960 = sbr.rel (%p1958) target = $region84
      $region83: #{tpu_custom_call.1} parent=5 // pred_region
        %s1961 = ssub.s32 %s32, 2
        // Predicated region
        $region85: #{tpu_custom_call.1} parent=83 // pred_check
          %p1962 = pneg %p313
        $region86: #{tpu_custom_call.1} parent=83 // pred_check_branch
          %1964 = sbr.rel (%p1962) target = $region88
        $region87: #{tpu_custom_call.1} parent=83 // pred_region
          %s1965 = sand.u32 %s298, 1
          %s1966 = scalar_lea.sflag [#allocation6], %s1965
          %s1967 = sand.u32 %s298, 1
          %s1968 = smul.addr %s1967, 8
          %s1969 = scalar_lea.vmem [#allocation13], %s1968
          %1970 = dma.done %s1966, 128
        $region88: #{tpu_custom_call.1} parent=83 // pred_fallthru
          _
      $region84: #{tpu_custom_call.1} parent=5 // pred_fallthru
        _
    $region6: #{tpu_custom_call.1} parent=1 // loop_footer
      %s36 = sadd.s32 1, %s32
    $region7: #{tpu_custom_call.1} parent=1 // loop_footer_branch
      %31 = sbr.rel target = $region3
    $region8: #{tpu_custom_call.1} parent=1 // loop_exit
      _
    %1971 = vsyncpa [#allocation5], 1
    %s1972 = scalar_lea.sflag [#allocation5], 1
    %1973 = vsyncpa %s1972, 1
    %1974 = vsyncpa [#allocation8], 1
    %s1975 = scalar_lea.sflag [#allocation8], 1
    %1976 = vsyncpa %s1975, 1
    %1977 = vsyncpa [#allocation11], 1
    %s1978 = scalar_lea.sflag [#allocation11], 1
    %1979 = vsyncpa %s1978, 1
    %1980 = vsyncpa [#allocation6], 1
    %s1981 = scalar_lea.sflag [#allocation6], 1
    %1982 = vsyncpa %s1981, 1

</llo_original>
